<compile_context>
chip_gen: v7x
topology: tpu7x:2x2x1
jax: 0.10.0
libtpu: 0.0.40
codegen_flags: <defaults>
</compile_context>

<pallas_src>
import functools

import jax
import jax.numpy as jnp
from jax.experimental import pallas as pl
from jax.experimental.pallas import tpu as pltpu


def _round_up(x, m):
    return (x + m - 1) // m * m


def _block_vmem_bytes(shape, dtype):
    """Approximate VMEM bytes of one pipeline buffer holding `shape` of `dtype`."""
    itemsize = jnp.dtype(dtype).itemsize
    sub = 8 * max(1, 4 // itemsize)          # (8,128) f32 tiles, (16,128) bf16, ...
    if len(shape) == 1:
        return _round_up(int(shape[0]), 128) * itemsize
    lead = 1
    for d in shape[:-2]:
        lead *= int(d)
    return (lead * _round_up(int(shape[-2]), sub)
            * _round_up(int(shape[-1]), 128) * itemsize)


def _conv_bn_kernel(x_ref, w_ref, scale_ref, shift_ref, o_ref, *,
                    taps, tr, wo, relu):
    # x_ref:     (1, Hs, Ws, Cs)  space-to-depth padded input, resident per batch
    # w_ref:     (T, Cs, tn)      per-(qh,qw) weight matrices (resident per c-tile)
    # scale_ref: (1, tn) f32      BN scale  = gamma / sqrt(var + eps)
    # shift_ref: (1, tn) f32      BN shift  = beta - mean * scale
    # o_ref:     (1, tr, Wo, tn)
    m = pl.program_id(2)
    r0 = m * tr
    if tr > 0 and (tr & (tr - 1)) == 0:       # alignment hint when tr is a pow2
        r0 = pl.multiple_of(r0, tr)
    cs = x_ref.shape[-1]

    acc = None
    for t, (qh, qw) in enumerate(taps):
        # In-kernel im2col: contiguous (tr, Wo, Cs) window for this tap.
        lhs = x_ref[0, pl.ds(r0 + qh, tr), pl.ds(qw, wo), :]
        lhs = lhs.reshape(tr * wo, cs)
        part = jnp.dot(lhs, w_ref[t], preferred_element_type=jnp.float32)
        acc = part if acc is None else acc + part

    # BatchNorm applied to the f32 accumulator (not folded into bf16 weights).
    y = acc * scale_ref[...] + shift_ref[...]
    if relu:
        y = jnp.maximum(y, 0.0)
    o_ref[0] = y.reshape(tr, wo, -1).astype(o_ref.dtype)


def conv_bn_nhwc(x_nhwc, weight_oihw, gamma, beta, running_mean, running_var,
                 *, stride=1, padding=0, dilation=1, eps=1e-5, relu=False,
                 compute_dtype=jnp.bfloat16, out_dtype=None,
                 target_block_pixels=1024, cout_block=None):
    """Conv2d(bias=False) + BatchNorm2d(eval) [+ ReLU]; NHWC in -> NHWC out.

    Returns (N, Ho, Wo, Npad) with Npad = round_up(Cout, 128).  The channel
    padding (zero channels) is kept so downstream layers see lane-dense inputs;
    fold the zero channels into the next layer's weights instead of slicing.
    """
    N, H, W, Cin = x_nhwc.shape
    Cout, Cin_w, KH, KW = weight_oihw.shape
    assert Cin == Cin_w
    s = int(stride)
    dil = int(dilation)
    out_dtype = x_nhwc.dtype if out_dtype is None else out_dtype

    Ho = (H + 2 * padding - dil * (KH - 1) - 1) // s + 1
    Wo = (W + 2 * padding - dil * (KW - 1) - 1) // s + 1
    assert Ho > 0 and Wo > 0

    # ---- BatchNorm (eval) folded to per-channel scale/shift (applied in f32).
    scale = (gamma.astype(jnp.float32)
             / jnp.sqrt(running_var.astype(jnp.float32) + eps))
    shift = beta.astype(jnp.float32) - running_mean.astype(jnp.float32) * scale

    # ---- Tap bookkeeping in the space-to-depth domain (factor = stride):
    #      original tap (kh, kw) -> spatial shift (qh, qw) = (kh*dil//s, kw*dil//s)
    #      with phase channel offset ((kh*dil % s)*s + kw*dil % s) * Cin.
    QH = sorted({(kh * dil) // s for kh in range(KH)})
    QW = sorted({(kw * dil) // s for kw in range(KW)})
    Ti, Tj = len(QH), len(QW)
    Cs = s * s * Cin

    # ---- Row tiling: ~target_block_pixels output pixels per grid step
    #      (512-1024 amortises the per-step pipeline overhead), chosen so tr
    #      divides Ho exactly -> no output rows to slice afterwards.
    tr = max(1, min(Ho, -(-target_block_pixels // Wo)))
    while Ho % tr:
        tr -= 1
    n_row_tiles = Ho // tr

    # ---- Output channel tiling (lane-dense; tn=256 fills the v6e/v7x MXU and
    #      keeps the resident weight block small for deep layers on v7x VMEM).
    Npad = _round_up(Cout, 128)
    if cout_block is None:
        tn = 256 if (Npad % 256 == 0) else 128
    else:
        tn = min(_round_up(int(cout_block), 128), Npad)
        if Npad % tn:
            tn = 128
    n_ctiles = Npad // tn

    # ---- Pad + space-to-depth the input: ONE relayout pass over the input
    #      bytes (vs. the old KH*KW-expanded im2col tensor in HBM).
    qh_max, qw_max = QH[-1], QW[-1]
    H_tot = _round_up(max(H + 2 * padding, (Ho + qh_max) * s), s)
    W_tot = _round_up(max(W + 2 * padding, (Wo + qw_max) * s), s)
    x_pad = jnp.pad(x_nhwc, ((0, 0),
                             (padding, H_tot - H - padding),
                             (padding, W_tot - W - padding),
                             (0, 0)))
    Hs, Ws = H_tot // s, W_tot // s
    x_s2d = (x_pad.reshape(N, Hs, s, Ws, s, Cin)
             .transpose(0, 1, 3, 2, 4, 5)
             .reshape(N, Hs, Ws, Cs)
             .astype(compute_dtype))

    # ---- Regroup OIHW weights into per-(qh, qw) matrices of shape (Cs, Npad).
    w_hwio = jnp.transpose(weight_oihw, (2, 3, 1, 0)).astype(jnp.float32)
    wq = jnp.zeros((Ti, s, Tj, s, Cin, Cout), jnp.float32)
    for kh in range(KH):
        qh, ph = divmod(kh * dil, s)
        i = QH.index(qh)
        for kw in range(KW):
            qw, pw = divmod(kw * dil, s)
            j = QW.index(qw)
            wq = wq.at[i, ph, j, pw].set(w_hwio[kh, kw])
    wq = wq.transpose(0, 2, 1, 3, 4, 5).reshape(Ti * Tj, Cs, Cout)
    wq = jnp.pad(wq, ((0, 0), (0, 0), (0, Npad - Cout))).astype(compute_dtype)

    scale_p = jnp.pad(scale, (0, Npad - Cout)).reshape(1, Npad)
    shift_p = jnp.pad(shift, (0, Npad - Cout)).reshape(1, Npad)

    taps = tuple((qh, qw) for qh in QH for qw in QW)
    kernel = functools.partial(_conv_bn_kernel, taps=taps, tr=tr, wo=Wo,
                               relu=relu)

    # ---- VMEM budget from the actual block footprint (double-buffered),
    #      capped by the device's VMEM capacity (v7x: 64 MiB, v5e/v6e: 128 MiB).
    footprint = 2 * (_block_vmem_bytes((1, Hs, Ws, Cs), compute_dtype)
                     + _block_vmem_bytes((Ti * Tj, Cs, tn), compute_dtype)
                     + 2 * _block_vmem_bytes((1, tn), jnp.float32)
                     + _block_vmem_bytes((1, tr, Wo, tn), out_dtype))
    try:
        vmem_cap = int(0.7 * pltpu.get_tpu_info().vmem_capacity_bytes)
    except Exception:
        vmem_cap = 48 * 1024 * 1024
    vmem_limit = min(max(int(1.25 * footprint), 32 * 1024 * 1024), vmem_cap)
    vmem_limit = max(vmem_limit, int(1.2 * footprint))

    out = pl.pallas_call(
        kernel,
        out_shape=jax.ShapeDtypeStruct((N, Ho, Wo, Npad), out_dtype),
        grid_spec=pltpu.PrefetchScalarGridSpec(
            num_scalar_prefetch=0,
            grid=(N, n_ctiles, n_row_tiles),
            in_specs=[
                # Padded s2d input: constant index across (c-tile, row-tile)
                # axes -> stays resident, re-fetched only per batch element.
                pl.BlockSpec((1, Hs, Ws, Cs), lambda n, j, m: (n, 0, 0, 0)),
                # Weights / scale / shift: constant across the inner row-tile
                # axis -> resident.  (pl.Buffered(1) could single-buffer these;
                # they are already small because of the Cout tiling.)
                pl.BlockSpec((Ti * Tj, Cs, tn), lambda n, j, m: (0, 0, j)),
                pl.BlockSpec((1, tn), lambda n, j, m: (0, j)),
                pl.BlockSpec((1, tn), lambda n, j, m: (0, j)),
            ],
            out_specs=pl.BlockSpec((1, tr, Wo, tn),
                                   lambda n, j, m: (n, m, 0, j)),
        ),
        compiler_params=pltpu.CompilerParams(
            # Every grid point writes a distinct output block -> fully parallel
            # (megacore friendly; with N==1 on v7x the c-tile / row-tile axes
            # still carry the 2-TensorCore split).
            dimension_semantics=("parallel", "parallel", "parallel"),
            vmem_limit_bytes=vmem_limit),
    )(x_s2d, wq, scale_p, shift_p)
    return out


def basic_conv2d(x_nchw, weight_oihw, gamma, beta, running_mean, running_var,
                 *, stride=1, padding=0, dilation=1, eps=1e-5, relu=False,
                 compute_dtype=jnp.bfloat16, out_dtype=None, **kwargs):
    """PyTorch-layout compatibility wrapper: NCHW in / NCHW out, exact Cout.

    The NCHW<->NHWC transposes and the channel un-padding live ONLY here; in an
    end-to-end NHWC pipeline call conv_bn_nhwc directly and keep the padded
    channels (fold the zero channels into the next layer's weights).
    """
    x_nhwc = jnp.transpose(x_nchw, (0, 2, 3, 1))
    out = conv_bn_nhwc(x_nhwc, weight_oihw, gamma, beta, running_mean,
                       running_var, stride=stride, padding=padding,
                       dilation=dilation, eps=eps, relu=relu,
                       compute_dtype=compute_dtype, out_dtype=out_dtype,
                       **kwargs)
    Cout = weight_oihw.shape[0]
    return jnp.transpose(out[..., :Cout], (0, 3, 1, 2))


def _reference(x_nchw, weight_oihw, gamma, beta, running_mean, running_var,
               *, stride, padding, dilation, eps=1e-5, relu=False):
    y = jax.lax.conv_general_dilated(
        x_nchw, weight_oihw,
        window_strides=(stride, stride),
        padding=[(padding, padding), (padding, padding)],
        rhs_dilation=(dilation, dilation),
        dimension_numbers=("NCHW", "OIHW", "NCHW"))
    scale = gamma / jnp.sqrt(running_var + eps)
    shift = beta - running_mean * scale
    y = y * scale[None, :, None, None] + shift[None, :, None, None]
    if relu:
        y = jnp.maximum(y, 0.0)
    return y


if __name__ == "__main__":
    key = jax.random.PRNGKey(0)

    def make_params(k, Cin, Cout, K):
        kx, kw_, kg, kb, km, kv = jax.random.split(k, 6)
        weight = jax.random.normal(kw_, (Cout, Cin, K, K), jnp.float32) * 0.1
        gamma = 1.0 + 0.1 * jax.random.normal(kg, (Cout,), jnp.float32)
        beta = 0.1 * jax.random.normal(kb, (Cout,), jnp.float32)
        mean = 0.1 * jax.random.normal(km, (Cout,), jnp.float32)
        var = jnp.abs(1.0 + 0.1 * jax.random.normal(kv, (Cout,), jnp.float32))
        return kx, weight, gamma, beta, mean, var

    k1, k2, k3 = jax.random.split(key, 3)

    # ---- Case 1: 3x3 / stride-1 conv + BN, f32 MXU path, multiple row tiles.
    N, Cin, H, W, Cout, K, pad = 2, 4, 16, 16, 8, 3, 1
    kx, weight, gamma, beta, mean, var = make_params(k1, Cin, Cout, K)
    x = jax.random.normal(kx, (N, Cin, H, W), jnp.float32)
    out = basic_conv2d(x, weight, gamma, beta, mean, var, stride=1, padding=pad,
                       compute_dtype=jnp.float32, target_block_pixels=64)
    out = jax.block_until_ready(out)
    ref = _reference(x, weight, gamma, beta, mean, var,
                     stride=1, padding=pad, dilation=1)
    assert out.shape == (N, Cout, H, W)
    assert jnp.allclose(out, ref, atol=1e-2, rtol=1e-2), \
        float(jnp.max(jnp.abs(out - ref)))

    # ---- Case 2: same layer on the default bf16 MXU path (inference default).
    out_bf16 = basic_conv2d(x, weight, gamma, beta, mean, var,
                            stride=1, padding=pad)
    out_bf16 = jax.block_until_ready(out_bf16)
    assert jnp.allclose(out_bf16, ref, atol=5e-2, rtol=5e-2), \
        float(jnp.max(jnp.abs(out_bf16 - ref)))

    # ---- Case 3: 7x7 / stride-2 conv + BN + ReLU (FA_encoder stem shape).
    N3, Cin3, H3, W3, Cout3, K3, pad3, s3 = 2, 3, 16, 16, 8, 7, 3, 2
    kx3, w3, g3, b3, m3, v3 = make_params(k2, Cin3, Cout3, K3)
    x3 = jax.random.normal(kx3, (N3, Cin3, H3, W3), jnp.float32)
    out3 = basic_conv2d(x3, w3, g3, b3, m3, v3, stride=s3, padding=pad3,
                        relu=True, compute_dtype=jnp.float32)
    out3 = jax.block_until_ready(out3)
    ref3 = _reference(x3, w3, g3, b3, m3, v3,
                      stride=s3, padding=pad3, dilation=1, relu=True)
    assert out3.shape == ref3.shape
    assert jnp.allclose(out3, ref3, atol=1e-2, rtol=1e-2), \
        float(jnp.max(jnp.abs(out3 - ref3)))

    # ---- Case 4: 1x1 bottleneck-style conv with output-channel tiling
    #      (2 c-tiles) and batch 1.
    N4, Cin4, H4, W4, Cout4 = 1, 32, 8, 8, 192
    kx4, w4, g4, b4, m4, v4 = make_params(k3, Cin4, Cout4, 1)
    x4 = jax.random.normal(kx4, (N4, Cin4, H4, W4), jnp.float32)
    out4 = basic_conv2d(x4, w4, g4, b4, m4, v4, stride=1, padding=0,
                        compute_dtype=jnp.float32, cout_block=128)
    out4 = jax.block_until_ready(out4)
    ref4 = _reference(x4, w4, g4, b4, m4, v4, stride=1, padding=0, dilation=1)
    assert out4.shape == ref4.shape
    assert jnp.allclose(out4, ref4, atol=1e-2, rtol=1e-2), \
        float(jnp.max(jnp.abs(out4 - ref4)))

    print("KERNEL_OK")
</pallas_src>

<mosaic_0001>
module attributes {stable_mosaic.version = 11 : i64} {
  func.func @_conv_bn_kernel(%arg0: i32, %arg1: i32, %arg2: i32, %arg3: memref<1x18x18x4xf32, #tpu.memory_space<vmem>>, %arg4: memref<9x4x128xf32, #tpu.memory_space<vmem>>, %arg5: memref<1x128xf32, #tpu.memory_space<vmem>>, %arg6: memref<1x128xf32, #tpu.memory_space<vmem>>, %arg7: memref<1x4x16x128xf32, #tpu.memory_space<vmem>>) attributes {dimension_semantics = [#tpu.dimension_semantics<parallel>, #tpu.dimension_semantics<parallel>, #tpu.dimension_semantics<parallel>], iteration_bounds = array<i64: 2, 1, 4>, scalar_prefetch = 0 : i64, scratch_operands = 0 : i64, tpu.core_type = #tpu.core_type<tc>, window_params = [{transform_indices = @transform_0, window_bounds = array<i64: 1, 18, 18, 4>}, {transform_indices = @transform_1, window_bounds = array<i64: 9, 4, 128>}, {transform_indices = @transform_2, window_bounds = array<i64: 1, 128>}, {transform_indices = @transform_3, window_bounds = array<i64: 1, 128>}, {transform_indices = @transform_4, window_bounds = array<i64: 1, 4, 16, 128>}]} {
    %c4_i32 = arith.constant 4 : i32
    %0 = arith.muli %arg2, %c4_i32 : i32
    %1 = tpu.assume_multiple %0, 4 : i32
    %c0_i32 = arith.constant 0 : i32
    %2 = arith.addi %1, %c0_i32 : i32
    %c0 = arith.constant 0 : index
    %3 = arith.index_cast %2 : i32 to index
    %c0_0 = arith.constant 0 : index
    %c0_1 = arith.constant 0 : index
    %4 = vector.load %arg3[%c0, %3, %c0_0, %c0_1] : memref<1x18x18x4xf32, #tpu.memory_space<vmem>>, vector<1x4x16x4xf32>
    %5 = vector.shape_cast %4 : vector<1x4x16x4xf32> to vector<4x16x4xf32>
    %6 = vector.shape_cast %5 : vector<4x16x4xf32> to vector<64x4xf32>
    %c0_2 = arith.constant 0 : index
    %c0_3 = arith.constant 0 : index
    %c0_4 = arith.constant 0 : index
    %7 = vector.load %arg4[%c0_2, %c0_3, %c0_4] : memref<9x4x128xf32, #tpu.memory_space<vmem>>, vector<1x4x128xf32>
    %8 = vector.shape_cast %7 : vector<1x4x128xf32> to vector<4x128xf32>
    %cst = arith.constant dense<0.000000e+00> : vector<64x128xf32>
    %9 = tpu.matmul %6, %8, %cst {dimension_numbers = #tpu.dot_dimension_numbers<[1], [0], [0], [1], [0, 0, 1, 1], [], []>} : vector<64x4xf32>, vector<4x128xf32>, vector<64x128xf32> -> vector<64x128xf32>
    %c0_i32_5 = arith.constant 0 : i32
    %10 = arith.addi %1, %c0_i32_5 : i32
    %c0_6 = arith.constant 0 : index
    %11 = arith.index_cast %10 : i32 to index
    %c1 = arith.constant 1 : index
    %c0_7 = arith.constant 0 : index
    %12 = vector.load %arg3[%c0_6, %11, %c1, %c0_7] : memref<1x18x18x4xf32, #tpu.memory_space<vmem>>, vector<1x4x16x4xf32>
    %13 = vector.shape_cast %12 : vector<1x4x16x4xf32> to vector<4x16x4xf32>
    %14 = vector.shape_cast %13 : vector<4x16x4xf32> to vector<64x4xf32>
    %c1_8 = arith.constant 1 : index
    %c0_9 = arith.constant 0 : index
    %c0_10 = arith.constant 0 : index
    %15 = vector.load %arg4[%c1_8, %c0_9, %c0_10] : memref<9x4x128xf32, #tpu.memory_space<vmem>>, vector<1x4x128xf32>
    %16 = vector.shape_cast %15 : vector<1x4x128xf32> to vector<4x128xf32>
    %cst_11 = arith.constant dense<0.000000e+00> : vector<64x128xf32>
    %17 = tpu.matmul %14, %16, %cst_11 {dimension_numbers = #tpu.dot_dimension_numbers<[1], [0], [0], [1], [0, 0, 1, 1], [], []>} : vector<64x4xf32>, vector<4x128xf32>, vector<64x128xf32> -> vector<64x128xf32>
    %18 = arith.addf %9, %17 : vector<64x128xf32>
    %c0_i32_12 = arith.constant 0 : i32
    %19 = arith.addi %1, %c0_i32_12 : i32
    %c0_13 = arith.constant 0 : index
    %20 = arith.index_cast %19 : i32 to index
    %c2 = arith.constant 2 : index
    %c0_14 = arith.constant 0 : index
    %21 = vector.load %arg3[%c0_13, %20, %c2, %c0_14] : memref<1x18x18x4xf32, #tpu.memory_space<vmem>>, vector<1x4x16x4xf32>
    %22 = vector.shape_cast %21 : vector<1x4x16x4xf32> to vector<4x16x4xf32>
    %23 = vector.shape_cast %22 : vector<4x16x4xf32> to vector<64x4xf32>
    %c2_15 = arith.constant 2 : index
    %c0_16 = arith.constant 0 : index
    %c0_17 = arith.constant 0 : index
    %24 = vector.load %arg4[%c2_15, %c0_16, %c0_17] : memref<9x4x128xf32, #tpu.memory_space<vmem>>, vector<1x4x128xf32>
    %25 = vector.shape_cast %24 : vector<1x4x128xf32> to vector<4x128xf32>
    %cst_18 = arith.constant dense<0.000000e+00> : vector<64x128xf32>
    %26 = tpu.matmul %23, %25, %cst_18 {dimension_numbers = #tpu.dot_dimension_numbers<[1], [0], [0], [1], [0, 0, 1, 1], [], []>} : vector<64x4xf32>, vector<4x128xf32>, vector<64x128xf32> -> vector<64x128xf32>
    %27 = arith.addf %18, %26 : vector<64x128xf32>
    %c1_i32 = arith.constant 1 : i32
    %28 = arith.addi %1, %c1_i32 : i32
    %c0_19 = arith.constant 0 : index
    %29 = arith.index_cast %28 : i32 to index
    %c0_20 = arith.constant 0 : index
    %c0_21 = arith.constant 0 : index
    %30 = vector.load %arg3[%c0_19, %29, %c0_20, %c0_21] : memref<1x18x18x4xf32, #tpu.memory_space<vmem>>, vector<1x4x16x4xf32>
    %31 = vector.shape_cast %30 : vector<1x4x16x4xf32> to vector<4x16x4xf32>
    %32 = vector.shape_cast %31 : vector<4x16x4xf32> to vector<64x4xf32>
    %c3 = arith.constant 3 : index
    %c0_22 = arith.constant 0 : index
    %c0_23 = arith.constant 0 : index
    %33 = vector.load %arg4[%c3, %c0_22, %c0_23] : memref<9x4x128xf32, #tpu.memory_space<vmem>>, vector<1x4x128xf32>
    %34 = vector.shape_cast %33 : vector<1x4x128xf32> to vector<4x128xf32>
    %cst_24 = arith.constant dense<0.000000e+00> : vector<64x128xf32>
    %35 = tpu.matmul %32, %34, %cst_24 {dimension_numbers = #tpu.dot_dimension_numbers<[1], [0], [0], [1], [0, 0, 1, 1], [], []>} : vector<64x4xf32>, vector<4x128xf32>, vector<64x128xf32> -> vector<64x128xf32>
    %36 = arith.addf %27, %35 : vector<64x128xf32>
    %c1_i32_25 = arith.constant 1 : i32
    %37 = arith.addi %1, %c1_i32_25 : i32
    %c0_26 = arith.constant 0 : index
    %38 = arith.index_cast %37 : i32 to index
    %c1_27 = arith.constant 1 : index
    %c0_28 = arith.constant 0 : index
    %39 = vector.load %arg3[%c0_26, %38, %c1_27, %c0_28] : memref<1x18x18x4xf32, #tpu.memory_space<vmem>>, vector<1x4x16x4xf32>
    %40 = vector.shape_cast %39 : vector<1x4x16x4xf32> to vector<4x16x4xf32>
    %41 = vector.shape_cast %40 : vector<4x16x4xf32> to vector<64x4xf32>
    %c4 = arith.constant 4 : index
    %c0_29 = arith.constant 0 : index
    %c0_30 = arith.constant 0 : index
    %42 = vector.load %arg4[%c4, %c0_29, %c0_30] : memref<9x4x128xf32, #tpu.memory_space<vmem>>, vector<1x4x128xf32>
    %43 = vector.shape_cast %42 : vector<1x4x128xf32> to vector<4x128xf32>
    %cst_31 = arith.constant dense<0.000000e+00> : vector<64x128xf32>
    %44 = tpu.matmul %41, %43, %cst_31 {dimension_numbers = #tpu.dot_dimension_numbers<[1], [0], [0], [1], [0, 0, 1, 1], [], []>} : vector<64x4xf32>, vector<4x128xf32>, vector<64x128xf32> -> vector<64x128xf32>
    %45 = arith.addf %36, %44 : vector<64x128xf32>
    %c1_i32_32 = arith.constant 1 : i32
    %46 = arith.addi %1, %c1_i32_32 : i32
    %c0_33 = arith.constant 0 : index
    %47 = arith.index_cast %46 : i32 to index
    %c2_34 = arith.constant 2 : index
    %c0_35 = arith.constant 0 : index
    %48 = vector.load %arg3[%c0_33, %47, %c2_34, %c0_35] : memref<1x18x18x4xf32, #tpu.memory_space<vmem>>, vector<1x4x16x4xf32>
    %49 = vector.shape_cast %48 : vector<1x4x16x4xf32> to vector<4x16x4xf32>
    %50 = vector.shape_cast %49 : vector<4x16x4xf32> to vector<64x4xf32>
    %c5 = arith.constant 5 : index
    %c0_36 = arith.constant 0 : index
    %c0_37 = arith.constant 0 : index
    %51 = vector.load %arg4[%c5, %c0_36, %c0_37] : memref<9x4x128xf32, #tpu.memory_space<vmem>>, vector<1x4x128xf32>
    %52 = vector.shape_cast %51 : vector<1x4x128xf32> to vector<4x128xf32>
    %cst_38 = arith.constant dense<0.000000e+00> : vector<64x128xf32>
    %53 = tpu.matmul %50, %52, %cst_38 {dimension_numbers = #tpu.dot_dimension_numbers<[1], [0], [0], [1], [0, 0, 1, 1], [], []>} : vector<64x4xf32>, vector<4x128xf32>, vector<64x128xf32> -> vector<64x128xf32>
    %54 = arith.addf %45, %53 : vector<64x128xf32>
    %c2_i32 = arith.constant 2 : i32
    %55 = arith.addi %1, %c2_i32 : i32
    %c0_39 = arith.constant 0 : index
    %56 = arith.index_cast %55 : i32 to index
    %c0_40 = arith.constant 0 : index
    %c0_41 = arith.constant 0 : index
    %57 = vector.load %arg3[%c0_39, %56, %c0_40, %c0_41] : memref<1x18x18x4xf32, #tpu.memory_space<vmem>>, vector<1x4x16x4xf32>
    %58 = vector.shape_cast %57 : vector<1x4x16x4xf32> to vector<4x16x4xf32>
    %59 = vector.shape_cast %58 : vector<4x16x4xf32> to vector<64x4xf32>
    %c6 = arith.constant 6 : index
    %c0_42 = arith.constant 0 : index
    %c0_43 = arith.constant 0 : index
    %60 = vector.load %arg4[%c6, %c0_42, %c0_43] : memref<9x4x128xf32, #tpu.memory_space<vmem>>, vector<1x4x128xf32>
    %61 = vector.shape_cast %60 : vector<1x4x128xf32> to vector<4x128xf32>
    %cst_44 = arith.constant dense<0.000000e+00> : vector<64x128xf32>
    %62 = tpu.matmul %59, %61, %cst_44 {dimension_numbers = #tpu.dot_dimension_numbers<[1], [0], [0], [1], [0, 0, 1, 1], [], []>} : vector<64x4xf32>, vector<4x128xf32>, vector<64x128xf32> -> vector<64x128xf32>
    %63 = arith.addf %54, %62 : vector<64x128xf32>
    %c2_i32_45 = arith.constant 2 : i32
    %64 = arith.addi %1, %c2_i32_45 : i32
    %c0_46 = arith.constant 0 : index
    %65 = arith.index_cast %64 : i32 to index
    %c1_47 = arith.constant 1 : index
    %c0_48 = arith.constant 0 : index
    %66 = vector.load %arg3[%c0_46, %65, %c1_47, %c0_48] : memref<1x18x18x4xf32, #tpu.memory_space<vmem>>, vector<1x4x16x4xf32>
    %67 = vector.shape_cast %66 : vector<1x4x16x4xf32> to vector<4x16x4xf32>
    %68 = vector.shape_cast %67 : vector<4x16x4xf32> to vector<64x4xf32>
    %c7 = arith.constant 7 : index
    %c0_49 = arith.constant 0 : index
    %c0_50 = arith.constant 0 : index
    %69 = vector.load %arg4[%c7, %c0_49, %c0_50] : memref<9x4x128xf32, #tpu.memory_space<vmem>>, vector<1x4x128xf32>
    %70 = vector.shape_cast %69 : vector<1x4x128xf32> to vector<4x128xf32>
    %cst_51 = arith.constant dense<0.000000e+00> : vector<64x128xf32>
    %71 = tpu.matmul %68, %70, %cst_51 {dimension_numbers = #tpu.dot_dimension_numbers<[1], [0], [0], [1], [0, 0, 1, 1], [], []>} : vector<64x4xf32>, vector<4x128xf32>, vector<64x128xf32> -> vector<64x128xf32>
    %72 = arith.addf %63, %71 : vector<64x128xf32>
    %c2_i32_52 = arith.constant 2 : i32
    %73 = arith.addi %1, %c2_i32_52 : i32
    %c0_53 = arith.constant 0 : index
    %74 = arith.index_cast %73 : i32 to index
    %c2_54 = arith.constant 2 : index
    %c0_55 = arith.constant 0 : index
    %75 = vector.load %arg3[%c0_53, %74, %c2_54, %c0_55] : memref<1x18x18x4xf32, #tpu.memory_space<vmem>>, vector<1x4x16x4xf32>
    %76 = vector.shape_cast %75 : vector<1x4x16x4xf32> to vector<4x16x4xf32>
    %77 = vector.shape_cast %76 : vector<4x16x4xf32> to vector<64x4xf32>
    %c8 = arith.constant 8 : index
    %c0_56 = arith.constant 0 : index
    %c0_57 = arith.constant 0 : index
    %78 = vector.load %arg4[%c8, %c0_56, %c0_57] : memref<9x4x128xf32, #tpu.memory_space<vmem>>, vector<1x4x128xf32>
    %79 = vector.shape_cast %78 : vector<1x4x128xf32> to vector<4x128xf32>
    %cst_58 = arith.constant dense<0.000000e+00> : vector<64x128xf32>
    %80 = tpu.matmul %77, %79, %cst_58 {dimension_numbers = #tpu.dot_dimension_numbers<[1], [0], [0], [1], [0, 0, 1, 1], [], []>} : vector<64x4xf32>, vector<4x128xf32>, vector<64x128xf32> -> vector<64x128xf32>
    %81 = arith.addf %72, %80 : vector<64x128xf32>
    %c0_59 = arith.constant 0 : index
    %c0_60 = arith.constant 0 : index
    %82 = vector.load %arg5[%c0_59, %c0_60] : memref<1x128xf32, #tpu.memory_space<vmem>>, vector<1x128xf32>
    %83 = vector.broadcast %82 : vector<1x128xf32> to vector<64x128xf32>
    %84 = arith.mulf %81, %83 : vector<64x128xf32>
    %c0_61 = arith.constant 0 : index
    %c0_62 = arith.constant 0 : index
    %85 = vector.load %arg6[%c0_61, %c0_62] : memref<1x128xf32, #tpu.memory_space<vmem>>, vector<1x128xf32>
    %86 = vector.broadcast %85 : vector<1x128xf32> to vector<64x128xf32>
    %87 = arith.addf %84, %86 : vector<64x128xf32>
    %88 = vector.shape_cast %87 : vector<64x128xf32> to vector<4x16x128xf32>
    %c0_63 = arith.constant 0 : index
    %c0_64 = arith.constant 0 : index
    %c0_65 = arith.constant 0 : index
    %c0_66 = arith.constant 0 : index
    %89 = vector.load %arg7[%c0_63, %c0_64, %c0_65, %c0_66] : memref<1x4x16x128xf32, #tpu.memory_space<vmem>>, vector<1x4x16x128xf32>
    %90 = vector.shape_cast %89 : vector<1x4x16x128xf32> to vector<4x16x128xf32>
    %91 = vector.shape_cast %88 : vector<4x16x128xf32> to vector<1x4x16x128xf32>
    tpu.vector_store %arg7[%c0_63, %c0_64, %c0_65, %c0_66], %91 {strides = array<i32>} : memref<1x4x16x128xf32, #tpu.memory_space<vmem>>, vector<1x4x16x128xf32>,
    return
  }
  func.func @transform_0(%arg0: i32, %arg1: i32, %arg2: i32) -> (i32, i32, i32, i32) {
    %c0_i32 = arith.constant 0 : i32
    %c0_i32_0 = arith.constant 0 : i32
    %c0_i32_1 = arith.constant 0 : i32
    %c0_i32_2 = arith.constant 0 : i32
    return %arg0, %c0_i32, %c0_i32_0, %c0_i32_1 : i32, i32, i32, i32
  }
  func.func @transform_1(%arg0: i32, %arg1: i32, %arg2: i32) -> (i32, i32, i32) {
    %c0_i32 = arith.constant 0 : i32
    %c0_i32_0 = arith.constant 0 : i32
    %c0_i32_1 = arith.constant 0 : i32
    return %c0_i32, %c0_i32_0, %arg1 : i32, i32, i32
  }
  func.func @transform_2(%arg0: i32, %arg1: i32, %arg2: i32) -> (i32, i32) {
    %c0_i32 = arith.constant 0 : i32
    %c0_i32_0 = arith.constant 0 : i32
    return %c0_i32, %arg1 : i32, i32
  }
  func.func @transform_3(%arg0: i32, %arg1: i32, %arg2: i32) -> (i32, i32) {
    %c0_i32 = arith.constant 0 : i32
    %c0_i32_0 = arith.constant 0 : i32
    return %c0_i32, %arg1 : i32, i32
  }
  func.func @transform_4(%arg0: i32, %arg1: i32, %arg2: i32) -> (i32, i32, i32, i32) {
    %c0_i32 = arith.constant 0 : i32
    %c0_i32_0 = arith.constant 0 : i32
    return %arg0, %arg2, %c0_i32, %arg1 : i32, i32, i32, i32
  }
}

</mosaic_0001>

<llo_original>
// kernel: tpu_custom_call.1
$region0: #{tpu_custom_call.1}
  #allocation0 [shape = 'u32[]', space=smem, size = 0x4, offset = 0x4, fixed_abs, tag = 'smem constant byte address 0x4 - core index']
  #allocation1 [shape = 'u32[144,128]{1,0:T(1,128)}', space=vmem, size = 0x12000, scoped, tag = 'internal scratch']
  %s0 = inlined_call_operand.vmem [shape: f32[2,18,18,4], index: 0, kind: input, shape index: {}]
  %s1 = inlined_call_operand.vmem [shape: f32[9,4,128], index: 1, kind: input, shape index: {}]
  %s2 = inlined_call_operand.vmem [shape: f32[1,128], index: 2, kind: input, shape index: {}]
  %s3 = inlined_call_operand.vmem [shape: f32[1,128], index: 3, kind: input, shape index: {}]
  %s4 = inlined_call_operand.hbm [shape: f32[2,16,16,128], index: 4, kind: output, shape index: {}]
  %s5 = sld [smem:[#allocation0]]
  $region49: #{tpu_custom_call.1} parent=0
    _
  %s7 = ssub.s32 1, %s5
  %s8 = scalar_select 0, %s7, %s5
  $region1: #{tpu_custom_call.1} parent=0
    #allocation2 [shape = 'u8[65536]{0}', space=vmem, size = 0x10000, scoped, tag = 'output window, operand 0']
    #allocation3 [shape = 's32[2]{0}', space=sflag, size = 0x8, scoped, tag = 'scoped memory for tpu_custom_call.1']
    %9 = vsyncpa [#allocation3], 0
    %s10 = scalar_lea.sflag [#allocation3], 1
    %11 = vsyncpa %s10, 0
    loop: start=0, step=1, limit=10
    $region2: #{tpu_custom_call.1} parent=1 // loop_pre_header
      _
    $region3: #{tpu_custom_call.1} parent=1 // loop_header
      %s13 = sphi 0, %s17
      %p14 = scmp.ge.s32.totalorder %s13, 10
      %s20 = sphi 0, %s39
      %s21 = sphi 0, %s35
      %s22 = sphi 0, %s31
      %s23 = sphi 0, %s20
      %s24 = sphi 0, %s21
      %s25 = sphi 0, %s22
      %s26 = sphi 0, %s23
      %s27 = sphi 0, %s24
      %s28 = sphi 0, %s25
      %s42 = sphi 0, %s44
      %s45 = sphi 0, %s42
      %s46 = sphi 0, %s45
      %s62 = sphi 0, %s46
      %s68 = sphi 0, %s70
      %s71 = sphi 0, %s68
      %s72 = sphi 0, %s71
      %s88 = sphi 0, %s72
      %s94 = sphi 0, %s96
      %s97 = sphi 0, %s94
      %s98 = sphi 0, %s97
      %s114 = sphi 0, %s98
      %s120 = sphi 0, %s122
      %s123 = sphi 0, %s120
      %s124 = sphi 0, %s123
      %s140 = sphi 0, %s124
      %s150 = sphi 0, %s152
      %s153 = sphi 0, %s150
      %s154 = sphi 0, %s153
      %s170 = sphi 0, %s154
    $region4: #{tpu_custom_call.1} parent=1 // loop_header_branch
      %16 = sbr.rel (%p14) target = $region8
    $region5: #{tpu_custom_call.1} parent=1 // loop_body
      %s18 = ssub.s32 %s13, 1
      %s19 = ssub.s32 %s13, 2
      %s29 = sadd.s32 1, %s22
      %p30 = scmp.ge.s32.totalorder %s29, 4
      %s31 = scalar_select %p30, 0, %s29
      %s32 = sadd.s32 1, %s21
      %s33 = scalar_select %p30, %s32, %s21
      %p34 = scmp.ge.s32.totalorder %s33, 1
      %s35 = scalar_select %p34, 0, %s33
      %s36 = sadd.s32 1, %s20
      %s37 = scalar_select %p34, %s36, %s20
      %p38 = scmp.ge.s32.totalorder %s37, 2
      %s39 = scalar_select %p38, 0, %s37
      %s40 = ssub.s32 %s20, %s39
      %p41 = scmp.eq.s32.totalorder %s40, 0
      %s43 = sadd.s32 %s42, 1
      %s44 = scalar_select %p41, %s42, %s43
      %p47 = pneg %p41
      %p48 = scmp.eq.s32.totalorder %s13, 7
      %p49 = por %p47, %p48
      %p50 = scmp.ne.s32.totalorder %s42, %s45
      %p51 = scmp.eq.s32.totalorder %s13, 0
      %p52 = por %p50, %p51
      %p53 = scmp.ne.s32.totalorder %s42, %s45
      %p54 = scmp.eq.s32.totalorder %s18, 7
      %p55 = por %p53, %p54
      %p56 = scmp.ne.s32.totalorder %s45, %s46
      %p57 = scmp.eq.s32.totalorder %s18, 0
      %p58 = por %p56, %p57
      %p59 = scmp.ne.s32.totalorder %s45, %s46
      %p60 = scmp.eq.s32.totalorder %s19, 7
      %p61 = por %p59, %p60
      %p63 = scmp.ne.s32.totalorder %s46, %s62
      %p64 = scmp.eq.s32.totalorder %s19, 0
      %p65 = por %p63, %p64
      %s66 = ssub.s32 %s21, %s35
      %p67 = scmp.eq.s32.totalorder %s66, 0
      %s69 = sadd.s32 %s68, 1
      %s70 = scalar_select %p67, %s68, %s69
      %p73 = pneg %p67
      %p74 = scmp.eq.s32.totalorder %s13, 7
      %p75 = por %p73, %p74
      %p76 = scmp.ne.s32.totalorder %s68, %s71
      %p77 = scmp.eq.s32.totalorder %s13, 0
      %p78 = por %p76, %p77
      %p79 = scmp.ne.s32.totalorder %s68, %s71
      %p80 = scmp.eq.s32.totalorder %s18, 7
      %p81 = por %p79, %p80
      %p82 = scmp.ne.s32.totalorder %s71, %s72
      %p83 = scmp.eq.s32.totalorder %s18, 0
      %p84 = por %p82, %p83
      %p85 = scmp.ne.s32.totalorder %s71, %s72
      %p86 = scmp.eq.s32.totalorder %s19, 7
      %p87 = por %p85, %p86
      %p89 = scmp.ne.s32.totalorder %s72, %s88
      %p90 = scmp.eq.s32.totalorder %s19, 0
      %p91 = por %p89, %p90
      %s92 = ssub.s32 %s21, %s35
      %p93 = scmp.eq.s32.totalorder %s92, 0
      %s95 = sadd.s32 %s94, 1
      %s96 = scalar_select %p93, %s94, %s95
      %p99 = pneg %p93
      %p100 = scmp.eq.s32.totalorder %s13, 7
      %p101 = por %p99, %p100
      %p102 = scmp.ne.s32.totalorder %s94, %s97
      %p103 = scmp.eq.s32.totalorder %s13, 0
      %p104 = por %p102, %p103
      %p105 = scmp.ne.s32.totalorder %s94, %s97
      %p106 = scmp.eq.s32.totalorder %s18, 7
      %p107 = por %p105, %p106
      %p108 = scmp.ne.s32.totalorder %s97, %s98
      %p109 = scmp.eq.s32.totalorder %s18, 0
      %p110 = por %p108, %p109
      %p111 = scmp.ne.s32.totalorder %s97, %s98
      %p112 = scmp.eq.s32.totalorder %s19, 7
      %p113 = por %p111, %p112
      %p115 = scmp.ne.s32.totalorder %s98, %s114
      %p116 = scmp.eq.s32.totalorder %s19, 0
      %p117 = por %p115, %p116
      %s118 = ssub.s32 %s21, %s35
      %p119 = scmp.eq.s32.totalorder %s118, 0
      %s121 = sadd.s32 %s120, 1
      %s122 = scalar_select %p119, %s120, %s121
      %p125 = pneg %p119
      %p126 = scmp.eq.s32.totalorder %s13, 7
      %p127 = por %p125, %p126
      %p128 = scmp.ne.s32.totalorder %s120, %s123
      %p129 = scmp.eq.s32.totalorder %s13, 0
      %p130 = por %p128, %p129
      %p131 = scmp.ne.s32.totalorder %s120, %s123
      %p132 = scmp.eq.s32.totalorder %s18, 7
      %p133 = por %p131, %p132
      %p134 = scmp.ne.s32.totalorder %s123, %s124
      %p135 = scmp.eq.s32.totalorder %s18, 0
      %p136 = por %p134, %p135
      %p137 = scmp.ne.s32.totalorder %s123, %s124
      %p138 = scmp.eq.s32.totalorder %s19, 7
      %p139 = por %p137, %p138
      %p141 = scmp.ne.s32.totalorder %s124, %s140
      %p142 = scmp.eq.s32.totalorder %s19, 0
      %p143 = por %p141, %p142
      %s144 = ssub.s32 %s20, %s39
      %s145 = ssub.s32 %s22, %s31
      %s146 = sor.u32 %s144, %s145
      %s147 = ssub.s32 %s21, %s35
      %s148 = sor.u32 %s146, %s147
      %p149 = scmp.eq.s32.totalorder %s148, 0
      %s151 = sadd.s32 %s150, 1
      %s152 = scalar_select %p149, %s150, %s151
      %p155 = pneg %p149
      %p156 = scmp.eq.s32.totalorder %s13, 7
      %p157 = por %p155, %p156
      %p158 = scmp.ne.s32.totalorder %s150, %s153
      %p159 = scmp.eq.s32.totalorder %s13, 0
      %p160 = por %p158, %p159
      %p161 = scmp.ne.s32.totalorder %s150, %s153
      %p162 = scmp.eq.s32.totalorder %s18, 7
      %p163 = por %p161, %p162
      %p164 = scmp.ne.s32.totalorder %s153, %s154
      %p165 = scmp.eq.s32.totalorder %s18, 0
      %p166 = por %p164, %p165
      %p167 = scmp.ne.s32.totalorder %s153, %s154
      %p168 = scmp.eq.s32.totalorder %s19, 7
      %p169 = por %p167, %p168
      %p171 = scmp.ne.s32.totalorder %s154, %s170
      %p172 = scmp.eq.s32.totalorder %s19, 0
      %p173 = por %p171, %p172
      %p174 = scmp.le.s32.totalorder 1, %s13
      %p175 = scmp.lt.s32.totalorder %s13, 9
      %p176 = pnand %p174, %p175
      %p177 = pneg %p176
      // Predicated region
      $region9: #{tpu_custom_call.1} parent=5 // pred_check
        _
      $region10: #{tpu_custom_call.1} parent=5 // pred_check_branch
        %179 = sbr.rel (%p176) target = $region12
      $region11: #{tpu_custom_call.1} parent=5 // pred_region
        %s180 = ssub.s32 %s13, 1
        // Predicated region
        $region13: #{tpu_custom_call.1} parent=11 // pred_check
          %p181 = pneg %p84
        $region14: #{tpu_custom_call.1} parent=11 // pred_check_branch
          %183 = sbr.rel (%p181) target = $region16
        $region15: #{tpu_custom_call.1} parent=11 // pred_region
          %p184 = scmp.lt.s32.totalorder %s24, 0
          %s185 = scalar_select %p184, %s24, 0
          %s186 = smul.addr %s185, 4
          %s187 = scalar_lea.vmem %s1, %s186
        $region16: #{tpu_custom_call.1} parent=11 // pred_fallthru
          _
        // Predicated region
        $region17: #{tpu_custom_call.1} parent=11 // pred_check
          %p188 = pneg %p110
        $region18: #{tpu_custom_call.1} parent=11 // pred_check_branch
          %190 = sbr.rel (%p188) target = $region20
        $region19: #{tpu_custom_call.1} parent=11 // pred_region
          %p191 = scmp.lt.s32.totalorder %s24, 0
          %s192 = scalar_select %p191, %s24, 0
          %s193 = scalar_lea.vmem %s2, %s192
        $region20: #{tpu_custom_call.1} parent=11 // pred_fallthru
          _
        // Predicated region
        $region21: #{tpu_custom_call.1} parent=11 // pred_check
          %p194 = pneg %p136
        $region22: #{tpu_custom_call.1} parent=11 // pred_check_branch
          %196 = sbr.rel (%p194) target = $region24
        $region23: #{tpu_custom_call.1} parent=11 // pred_region
          %p197 = scmp.lt.s32.totalorder %s24, 0
          %s198 = scalar_select %p197, %s24, 0
          %s199 = scalar_lea.vmem %s3, %s198
        $region24: #{tpu_custom_call.1} parent=11 // pred_fallthru
          _
      $region12: #{tpu_custom_call.1} parent=5 // pred_fallthru
        _
      %p200 = scmp.lt.s32.totalorder %s13, 8
      // Predicated region
      $region25: #{tpu_custom_call.1} parent=5 // pred_check
        %p201 = pneg %p200
      $region26: #{tpu_custom_call.1} parent=5 // pred_check_branch
        %203 = sbr.rel (%p201) target = $region28
      $region27: #{tpu_custom_call.1} parent=5 // pred_region
        // Predicated region
        $region29: #{tpu_custom_call.1} parent=27 // pred_check
          %p204 = pneg %p52
        $region30: #{tpu_custom_call.1} parent=27 // pred_check_branch
          %206 = sbr.rel (%p204) target = $region32
        $region31: #{tpu_custom_call.1} parent=27 // pred_region
          %p207 = scmp.lt.s32.totalorder %s20, 1
          %s208 = scalar_select %p207, %s20, 1
          %s209 = smul.addr %s208, 54
          %s210 = smul.addr %s209, 8
          %s211 = scalar_lea.vmem %s0, %s210
        $region32: #{tpu_custom_call.1} parent=27 // pred_fallthru
          _
      $region28: #{tpu_custom_call.1} parent=5 // pred_fallthru
        _
      %p212 = scmp.le.s32.totalorder 1, %s13
      %p213 = scmp.lt.s32.totalorder %s13, 9
      %p214 = pnand %p212, %p213
      %p215 = pneg %p214
      // Predicated region
      $region33: #{tpu_custom_call.1} parent=5 // pred_check
        _
      $region34: #{tpu_custom_call.1} parent=5 // pred_check_branch
        %217 = sbr.rel (%p214) target = $region36
      $region35: #{tpu_custom_call.1} parent=5 // pred_region
        %s218 = ssub.s32 %s13, 1
        %p219 = scmp.lt.s32.totalorder %s23, 1
        %s220 = scalar_select %p219, %s23, 1
        %s221 = smul.addr %s220, 54
        %s222 = smul.addr %s221, 8
        %s223 = scalar_lea.vmem %s0, %s222
        %p224 = pneg %p58
        %p225 = pneg %p55
        %p226 = scmp.lt.s32.totalorder %s24, 0
        %s227 = scalar_select %p226, %s24, 0
        %s228 = smul.addr %s227, 4
        %s229 = scalar_lea.vmem %s1, %s228
        %p230 = pneg %p84
        %p231 = pneg %p81
        %p232 = scmp.lt.s32.totalorder %s24, 0
        %s233 = scalar_select %p232, %s24, 0
        %s234 = scalar_lea.vmem %s2, %s233
        %p235 = pneg %p110
        %p236 = pneg %p107
        %p237 = scmp.lt.s32.totalorder %s24, 0
        %s238 = scalar_select %p237, %s24, 0
        %s239 = scalar_lea.vmem %s3, %s238
        %p240 = pneg %p136
        %p241 = pneg %p133
        %p242 = pneg %p166
        %p243 = pneg %p163
        %s244 = sand.u32 %s153, 1
        %s245 = scalar_lea.sflag [#allocation3], %s244
        %s246 = sand.u32 %s153, 1
        %s247 = smul.addr %s246, 64
        %s248 = scalar_lea.vmem [#allocation2], %s247
        %p249 = scmp.lt.s32.totalorder %s23, 1
        %s250 = scalar_select %p249, %s23, 1
        %s251 = smul.addr %s250, 54
        %s252 = smul.addr %s251, 8
        %s253 = scalar_lea.vmem %s0, %s252
        %p254 = scmp.lt.s32.totalorder %s24, 0
        %s255 = scalar_select %p254, %s24, 0
        %s256 = smul.addr %s255, 4
        %s257 = scalar_lea.vmem %s1, %s256
        %p258 = scmp.lt.s32.totalorder %s24, 0
        %s259 = scalar_select %p258, %s24, 0
        %s260 = scalar_lea.vmem %s2, %s259
        %p261 = scmp.lt.s32.totalorder %s24, 0
        %s262 = scalar_select %p261, %s24, 0
        %s263 = scalar_lea.vmem %s3, %s262
        %s264 = smul.u32 4, %s25
        %s265 = smul.u32 %s25, 4
        %s266 = smul.u32 %s265, 24
        %s267 = scalar_lea.vmem %s253, %s266
        %v268 = vld [vmem:[%s267] sm:$0xff]
        %v269 = vld [vmem:[%s267 + $0x8] sm:$0xff]
        %v270 = vld [vmem:[%s267 + $0x18] sm:$0xff]
        %v271 = vld [vmem:[%s267 + $0x20] sm:$0xff]
        %v272 = vld [vmem:[%s267 + $0x30] sm:$0xff]
        %v273 = vld [vmem:[%s267 + $0x38] sm:$0xff]
        %v274 = vld [vmem:[%s267 + $0x48] sm:$0xff]
        %v275 = vld [vmem:[%s267 + $0x50] sm:$0xff]
        %v276 = vld [vmem:[%s257] sm:$0xf]
        %v277 = vld [vmem:[%s267 + $0x1] sm:$0xff]
        %v278 = vld [vmem:[%s267 + $0x9] sm:$0xff]
        %v279 = vld [vmem:[%s267 + $0x19] sm:$0xff]
        %v280 = vld [vmem:[%s267 + $0x21] sm:$0xff]
        %v281 = vld [vmem:[%s267 + $0x31] sm:$0xff]
        %v282 = vld [vmem:[%s267 + $0x39] sm:$0xff]
        %v283 = vld [vmem:[%s267 + $0x49] sm:$0xff]
        %v284 = vld [vmem:[%s267 + $0x51] sm:$0xff]
        %s285 = scalar_lea.vmem %s257, 4
        %v286 = vld [vmem:[%s285] sm:$0xf]
        %vm287 = vcmask 31744
        %v289 = vsel %vm287, %v277, 0
        %v292 = vsel %vm287, %v278, 0
        %v295 = vsel %vm287, %v279, 0
        %v298 = vsel %vm287, %v280, 0
        %v301 = vsel %vm287, %v281, 0
        %v304 = vsel %vm287, %v282, 0
        %v307 = vsel %vm287, %v283, 0
        %v310 = vsel %vm287, %v284, 0
        %vm312 = vcmask 1043456
        %v314 = vsel %vm312, %v286, 0
        %316 = vmatprep.subr.mxu0 0.0
        %317 = vmatpush1.msra.mxu0 %v314
        %318 = vmatprep.subr.mxu0 0.0
        %319 = vmatpush1.msra.mxu0 0.0
        %320 = vmatprep.subr.mxu0 0.0
        %321 = vmatpush1.msra.mxu0 0.0
        %322 = vmatprep.subr.mxu0 0.0
        %323 = vmatpush1.msra.mxu0 0.0
        %324 = vmatprep.subr.mxu0 0.0
        %325 = vmatpush1.msra.mxu0 0.0
        %326 = vmatprep.subr.mxu0 0.0
        %327 = vmatpush1.msra.mxu0 0.0
        %328 = vmatprep.subr.mxu0 0.0
        %329 = vmatpush1.msra.mxu0 0.0
        %330 = vmatprep.subr.mxu0 0.0
        %331 = vmatpush1.msra.mxu0 0.0
        %332 = vmatprep.subr.mxu0 0.0
        %333 = vmatpush1.msra.mxu0 0.0
        %334 = vmatprep.subr.mxu0 0.0
        %335 = vmatpush1.msra.mxu0 0.0
        %336 = vmatprep.subr.mxu0 0.0
        %337 = vmatpush1.msra.mxu0 0.0
        %338 = vmatprep.subr.mxu0 0.0
        %339 = vmatpush1.msra.mxu0 0.0
        %340 = vmatprep.subr.mxu0 0.0
        %341 = vmatpush1.msra.mxu0 0.0
        %342 = vmatprep.subr.mxu0 0.0
        %343 = vmatpush1.msra.mxu0 0.0
        %344 = vmatprep.subr.mxu0 0.0
        %345 = vmatpush1.msra.mxu0 0.0
        %346 = vmatprep.subr.mxu0 0.0
        %347 = vmatpush1.msra.mxu0 0.0
        %348 = vmatprep.subr.mxu0 0.0
        %349 = vmatpush1.msra.mxu0 0.0
        %350 = vmatprep.subr.mxu0 0.0
        %351 = vmatpush1.msra.mxu0 0.0
        %352 = vmatprep.subr.mxu0 0.0
        %353 = vmatpush1.msra.mxu0 0.0
        %354 = vmatprep.subr.mxu0 0.0
        %355 = vmatpush1.msra.mxu0 0.0
        %356 = vmatprep.subr.mxu0 0.0
        %357 = vmatpush1.msra.mxu0 0.0
        %358 = vmatprep.subr.mxu0 0.0
        %359 = vmatpush1.msra.mxu0 0.0
        %360 = vmatprep.subr.mxu0 0.0
        %361 = vmatpush1.msra.mxu0 0.0
        %362 = vmatprep.subr.mxu0 0.0
        %363 = vmatpush1.msra.mxu0 0.0
        %364 = vmatprep.subr.mxu0 0.0
        %365 = vmatpush1.msra.mxu0 0.0
        %366 = vmatprep.subr.mxu0 0.0
        %367 = vmatpush1.msra.mxu0 0.0
        %368 = vmatprep.subr.mxu0 0.0
        %369 = vmatpush1.msra.mxu0 0.0
        %370 = vmatprep.subr.mxu0 0.0
        %371 = vmatpush1.msra.mxu0 0.0
        %372 = vmatprep.subr.mxu0 0.0
        %373 = vmatpush1.msra.mxu0 0.0
        %374 = vmatprep.subr.mxu0 0.0
        %375 = vmatpush1.msra.mxu0 0.0
        %376 = vmatprep.subr.mxu0 0.0
        %377 = vmatpush1.msra.mxu0 0.0
        %378 = vmatprep.subr.mxu0 0.0
        %379 = vmatpush1.msra.mxu0 0.0
        %380 = vmatprep.mubr.f32.mxu0 0.0
        %381 = vmatmul.mubr.f32.gmra.mrb[0].mxu0 %v289
        %v382 = vpop.f32.mrb[0].mxu0
        %v383 = vadd.f32 0.0, %v382
        %v384 = vpop.f32.mrb[0].mxu0
        %385 = vmatprep.mubr.f32.mxu0 0.0
        %386 = vmatmul.mubr.f32.gmra.mrb[0].mxu0 %v292
        %v387 = vpop.f32.mrb[0].mxu0
        %v388 = vadd.f32 0.0, %v387
        %v389 = vpop.f32.mrb[0].mxu0
        %390 = vmatprep.mubr.f32.mxu0 0.0
        %391 = vmatmul.mubr.f32.gmra.mrb[0].mxu0 %v295
        %v392 = vpop.f32.mrb[0].mxu0
        %v393 = vadd.f32 0.0, %v392
        %v394 = vpop.f32.mrb[0].mxu0
        %395 = vmatprep.mubr.f32.mxu0 0.0
        %396 = vmatmul.mubr.f32.gmra.mrb[0].mxu0 %v298
        %v397 = vpop.f32.mrb[0].mxu0
        %v398 = vadd.f32 0.0, %v397
        %v399 = vpop.f32.mrb[0].mxu0
        %400 = vmatprep.mubr.f32.mxu0 0.0
        %401 = vmatmul.mubr.f32.gmra.mrb[0].mxu0 %v301
        %v402 = vpop.f32.mrb[0].mxu0
        %v403 = vadd.f32 0.0, %v402
        %v404 = vpop.f32.mrb[0].mxu0
        %405 = vmatprep.mubr.f32.mxu0 0.0
        %406 = vmatmul.mubr.f32.gmra.mrb[0].mxu0 %v304
        %v407 = vpop.f32.mrb[0].mxu0
        %v408 = vadd.f32 0.0, %v407
        %v409 = vpop.f32.mrb[0].mxu0
        %410 = vmatprep.mubr.f32.mxu0 0.0
        %411 = vmatmul.mubr.f32.gmra.mrb[0].mxu0 %v307
        %v412 = vpop.f32.mrb[0].mxu0
        %v413 = vadd.f32 0.0, %v412
        %v414 = vpop.f32.mrb[0].mxu0
        %415 = vmatprep.mubr.f32.mxu0 0.0
        %416 = vmatmul.mubr.f32.gmra.mrb[0].mxu0 %v310
        %v417 = vpop.f32.mrb[0].mxu0
        %v418 = vadd.f32 0.0, %v417
        %v419 = vpop.f32.mrb[0].mxu0
        %420 = vdwg.mxu0
        %v422 = vsel %vm287, %v268, 0
        %v425 = vsel %vm287, %v269, 0
        %v428 = vsel %vm287, %v270, 0
        %v431 = vsel %vm287, %v271, 0
        %v434 = vsel %vm287, %v272, 0
        %v437 = vsel %vm287, %v273, 0
        %v440 = vsel %vm287, %v274, 0
        %v443 = vsel %vm287, %v275, 0
        %v446 = vsel %vm312, %v276, 0
        %448 = vmatprep.subr.mxu0 0.0
        %449 = vmatpush1.msra.mxu0 %v446
        %450 = vmatprep.subr.mxu0 0.0
        %451 = vmatpush1.msra.mxu0 0.0
        %452 = vmatprep.subr.mxu0 0.0
        %453 = vmatpush1.msra.mxu0 0.0
        %454 = vmatprep.subr.mxu0 0.0
        %455 = vmatpush1.msra.mxu0 0.0
        %456 = vmatprep.subr.mxu0 0.0
        %457 = vmatpush1.msra.mxu0 0.0
        %458 = vmatprep.subr.mxu0 0.0
        %459 = vmatpush1.msra.mxu0 0.0
        %460 = vmatprep.subr.mxu0 0.0
        %461 = vmatpush1.msra.mxu0 0.0
        %462 = vmatprep.subr.mxu0 0.0
        %463 = vmatpush1.msra.mxu0 0.0
        %464 = vmatprep.subr.mxu0 0.0
        %465 = vmatpush1.msra.mxu0 0.0
        %466 = vmatprep.subr.mxu0 0.0
        %467 = vmatpush1.msra.mxu0 0.0
        %468 = vmatprep.subr.mxu0 0.0
        %469 = vmatpush1.msra.mxu0 0.0
        %470 = vmatprep.subr.mxu0 0.0
        %471 = vmatpush1.msra.mxu0 0.0
        %472 = vmatprep.subr.mxu0 0.0
        %473 = vmatpush1.msra.mxu0 0.0
        %474 = vmatprep.subr.mxu0 0.0
        %475 = vmatpush1.msra.mxu0 0.0
        %476 = vmatprep.subr.mxu0 0.0
        %477 = vmatpush1.msra.mxu0 0.0
        %478 = vmatprep.subr.mxu0 0.0
        %479 = vmatpush1.msra.mxu0 0.0
        %480 = vmatprep.subr.mxu0 0.0
        %481 = vmatpush1.msra.mxu0 0.0
        %482 = vmatprep.subr.mxu0 0.0
        %483 = vmatpush1.msra.mxu0 0.0
        %484 = vmatprep.subr.mxu0 0.0
        %485 = vmatpush1.msra.mxu0 0.0
        %486 = vmatprep.subr.mxu0 0.0
        %487 = vmatpush1.msra.mxu0 0.0
        %488 = vmatprep.subr.mxu0 0.0
        %489 = vmatpush1.msra.mxu0 0.0
        %490 = vmatprep.subr.mxu0 0.0
        %491 = vmatpush1.msra.mxu0 0.0
        %492 = vmatprep.subr.mxu0 0.0
        %493 = vmatpush1.msra.mxu0 0.0
        %494 = vmatprep.subr.mxu0 0.0
        %495 = vmatpush1.msra.mxu0 0.0
        %496 = vmatprep.subr.mxu0 0.0
        %497 = vmatpush1.msra.mxu0 0.0
        %498 = vmatprep.subr.mxu0 0.0
        %499 = vmatpush1.msra.mxu0 0.0
        %500 = vmatprep.subr.mxu0 0.0
        %501 = vmatpush1.msra.mxu0 0.0
        %502 = vmatprep.subr.mxu0 0.0
        %503 = vmatpush1.msra.mxu0 0.0
        %504 = vmatprep.subr.mxu0 0.0
        %505 = vmatpush1.msra.mxu0 0.0
        %506 = vmatprep.subr.mxu0 0.0
        %507 = vmatpush1.msra.mxu0 0.0
        %508 = vmatprep.subr.mxu0 0.0
        %509 = vmatpush1.msra.mxu0 0.0
        %510 = vmatprep.subr.mxu0 0.0
        %511 = vmatpush1.msra.mxu0 0.0
        %512 = vmatprep.mubr.f32.mxu0 0.0
        %513 = vmatmul.mubr.f32.gmra.mrb[0].mxu0 %v422
        %v514 = vpop.f32.mrb[0].mxu0
        %v515 = vadd.f32 %v383, %v514
        %v516 = vpop.f32.mrb[0].mxu0
        %517 = vmatprep.mubr.f32.mxu0 0.0
        %518 = vmatmul.mubr.f32.gmra.mrb[0].mxu0 %v425
        %v519 = vpop.f32.mrb[0].mxu0
        %v520 = vadd.f32 %v388, %v519
        %v521 = vpop.f32.mrb[0].mxu0
        %522 = vmatprep.mubr.f32.mxu0 0.0
        %523 = vmatmul.mubr.f32.gmra.mrb[0].mxu0 %v428
        %v524 = vpop.f32.mrb[0].mxu0
        %v525 = vadd.f32 %v393, %v524
        %v526 = vpop.f32.mrb[0].mxu0
        %527 = vmatprep.mubr.f32.mxu0 0.0
        %528 = vmatmul.mubr.f32.gmra.mrb[0].mxu0 %v431
        %v529 = vpop.f32.mrb[0].mxu0
        %v530 = vadd.f32 %v398, %v529
        %v531 = vpop.f32.mrb[0].mxu0
        %532 = vmatprep.mubr.f32.mxu0 0.0
        %533 = vmatmul.mubr.f32.gmra.mrb[0].mxu0 %v434
        %v534 = vpop.f32.mrb[0].mxu0
        %v535 = vadd.f32 %v403, %v534
        %v536 = vpop.f32.mrb[0].mxu0
        %537 = vmatprep.mubr.f32.mxu0 0.0
        %538 = vmatmul.mubr.f32.gmra.mrb[0].mxu0 %v437
        %v539 = vpop.f32.mrb[0].mxu0
        %v540 = vadd.f32 %v408, %v539
        %v541 = vpop.f32.mrb[0].mxu0
        %542 = vmatprep.mubr.f32.mxu0 0.0
        %543 = vmatmul.mubr.f32.gmra.mrb[0].mxu0 %v440
        %v544 = vpop.f32.mrb[0].mxu0
        %v545 = vadd.f32 %v413, %v544
        %v546 = vpop.f32.mrb[0].mxu0
        %547 = vmatprep.mubr.f32.mxu0 0.0
        %548 = vmatmul.mubr.f32.gmra.mrb[0].mxu0 %v443
        %v549 = vpop.f32.mrb[0].mxu0
        %v550 = vadd.f32 %v418, %v549
        %v551 = vpop.f32.mrb[0].mxu0
        %552 = vdwg.mxu0
        %v553 = vld [vmem:[%s267 + $0x2] sm:$0xff]
        %v554 = vld [vmem:[%s267 + $0xa] sm:$0xff]
        %v555 = vld [vmem:[%s267 + $0x1a] sm:$0xff]
        %v556 = vld [vmem:[%s267 + $0x22] sm:$0xff]
        %v557 = vld [vmem:[%s267 + $0x32] sm:$0xff]
        %v558 = vld [vmem:[%s267 + $0x3a] sm:$0xff]
        %v559 = vld [vmem:[%s267 + $0x4a] sm:$0xff]
        %v560 = vld [vmem:[%s267 + $0x52] sm:$0xff]
        %s561 = scalar_lea.vmem %s257, 8
        %v562 = vld [vmem:[%s561] sm:$0xf]
        %v564 = vsel %vm287, %v553, 0
        %v567 = vsel %vm287, %v554, 0
        %v570 = vsel %vm287, %v555, 0
        %v573 = vsel %vm287, %v556, 0
        %v576 = vsel %vm287, %v557, 0
        %v579 = vsel %vm287, %v558, 0
        %v582 = vsel %vm287, %v559, 0
        %v585 = vsel %vm287, %v560, 0
        %v588 = vsel %vm312, %v562, 0
        %590 = vmatprep.subr.mxu0 0.0
        %591 = vmatpush1.msra.mxu0 %v588
        %592 = vmatprep.subr.mxu0 0.0
        %593 = vmatpush1.msra.mxu0 0.0
        %594 = vmatprep.subr.mxu0 0.0
        %595 = vmatpush1.msra.mxu0 0.0
        %596 = vmatprep.subr.mxu0 0.0
        %597 = vmatpush1.msra.mxu0 0.0
        %598 = vmatprep.subr.mxu0 0.0
        %599 = vmatpush1.msra.mxu0 0.0
        %600 = vmatprep.subr.mxu0 0.0
        %601 = vmatpush1.msra.mxu0 0.0
        %602 = vmatprep.subr.mxu0 0.0
        %603 = vmatpush1.msra.mxu0 0.0
        %604 = vmatprep.subr.mxu0 0.0
        %605 = vmatpush1.msra.mxu0 0.0
        %606 = vmatprep.subr.mxu0 0.0
        %607 = vmatpush1.msra.mxu0 0.0
        %608 = vmatprep.subr.mxu0 0.0
        %609 = vmatpush1.msra.mxu0 0.0
        %610 = vmatprep.subr.mxu0 0.0
        %611 = vmatpush1.msra.mxu0 0.0
        %612 = vmatprep.subr.mxu0 0.0
        %613 = vmatpush1.msra.mxu0 0.0
        %614 = vmatprep.subr.mxu0 0.0
        %615 = vmatpush1.msra.mxu0 0.0
        %616 = vmatprep.subr.mxu0 0.0
        %617 = vmatpush1.msra.mxu0 0.0
        %618 = vmatprep.subr.mxu0 0.0
        %619 = vmatpush1.msra.mxu0 0.0
        %620 = vmatprep.subr.mxu0 0.0
        %621 = vmatpush1.msra.mxu0 0.0
        %622 = vmatprep.subr.mxu0 0.0
        %623 = vmatpush1.msra.mxu0 0.0
        %624 = vmatprep.subr.mxu0 0.0
        %625 = vmatpush1.msra.mxu0 0.0
        %626 = vmatprep.subr.mxu0 0.0
        %627 = vmatpush1.msra.mxu0 0.0
        %628 = vmatprep.subr.mxu0 0.0
        %629 = vmatpush1.msra.mxu0 0.0
        %630 = vmatprep.subr.mxu0 0.0
        %631 = vmatpush1.msra.mxu0 0.0
        %632 = vmatprep.subr.mxu0 0.0
        %633 = vmatpush1.msra.mxu0 0.0
        %634 = vmatprep.subr.mxu0 0.0
        %635 = vmatpush1.msra.mxu0 0.0
        %636 = vmatprep.subr.mxu0 0.0
        %637 = vmatpush1.msra.mxu0 0.0
        %638 = vmatprep.subr.mxu0 0.0
        %639 = vmatpush1.msra.mxu0 0.0
        %640 = vmatprep.subr.mxu0 0.0
        %641 = vmatpush1.msra.mxu0 0.0
        %642 = vmatprep.subr.mxu0 0.0
        %643 = vmatpush1.msra.mxu0 0.0
        %644 = vmatprep.subr.mxu0 0.0
        %645 = vmatpush1.msra.mxu0 0.0
        %646 = vmatprep.subr.mxu0 0.0
        %647 = vmatpush1.msra.mxu0 0.0
        %648 = vmatprep.subr.mxu0 0.0
        %649 = vmatpush1.msra.mxu0 0.0
        %650 = vmatprep.subr.mxu0 0.0
        %651 = vmatpush1.msra.mxu0 0.0
        %652 = vmatprep.subr.mxu0 0.0
        %653 = vmatpush1.msra.mxu0 0.0
        %654 = vmatprep.mubr.f32.mxu0 0.0
        %655 = vmatmul.mubr.f32.gmra.mrb[0].mxu0 %v564
        %v656 = vpop.f32.mrb[0].mxu0
        %v657 = vadd.f32 0.0, %v656
        %v658 = vpop.f32.mrb[0].mxu0
        %659 = vmatprep.mubr.f32.mxu0 0.0
        %660 = vmatmul.mubr.f32.gmra.mrb[0].mxu0 %v567
        %v661 = vpop.f32.mrb[0].mxu0
        %v662 = vadd.f32 0.0, %v661
        %v663 = vpop.f32.mrb[0].mxu0
        %664 = vmatprep.mubr.f32.mxu0 0.0
        %665 = vmatmul.mubr.f32.gmra.mrb[0].mxu0 %v570
        %v666 = vpop.f32.mrb[0].mxu0
        %v667 = vadd.f32 0.0, %v666
        %v668 = vpop.f32.mrb[0].mxu0
        %669 = vmatprep.mubr.f32.mxu0 0.0
        %670 = vmatmul.mubr.f32.gmra.mrb[0].mxu0 %v573
        %v671 = vpop.f32.mrb[0].mxu0
        %v672 = vadd.f32 0.0, %v671
        %v673 = vpop.f32.mrb[0].mxu0
        %674 = vmatprep.mubr.f32.mxu0 0.0
        %675 = vmatmul.mubr.f32.gmra.mrb[0].mxu0 %v576
        %v676 = vpop.f32.mrb[0].mxu0
        %v677 = vadd.f32 0.0, %v676
        %v678 = vpop.f32.mrb[0].mxu0
        %679 = vmatprep.mubr.f32.mxu0 0.0
        %680 = vmatmul.mubr.f32.gmra.mrb[0].mxu0 %v579
        %v681 = vpop.f32.mrb[0].mxu0
        %v682 = vadd.f32 0.0, %v681
        %v683 = vpop.f32.mrb[0].mxu0
        %684 = vmatprep.mubr.f32.mxu0 0.0
        %685 = vmatmul.mubr.f32.gmra.mrb[0].mxu0 %v582
        %v686 = vpop.f32.mrb[0].mxu0
        %v687 = vadd.f32 0.0, %v686
        %v688 = vpop.f32.mrb[0].mxu0
        %689 = vmatprep.mubr.f32.mxu0 0.0
        %690 = vmatmul.mubr.f32.gmra.mrb[0].mxu0 %v585
        %v691 = vpop.f32.mrb[0].mxu0
        %v692 = vadd.f32 0.0, %v691
        %v693 = vpop.f32.mrb[0].mxu0
        %694 = vdwg.mxu0
        %v695 = vadd.f32 %v515, %v657
        %v696 = vadd.f32 %v520, %v662
        %v697 = vadd.f32 %v525, %v667
        %v698 = vadd.f32 %v530, %v672
        %v699 = vadd.f32 %v535, %v677
        %v700 = vadd.f32 %v540, %v682
        %v701 = vadd.f32 %v545, %v687
        %v702 = vadd.f32 %v550, %v692
        %s703 = sadd.s32 %s265, 1
        %s704 = smul.u32 %s703, 24
        %s705 = scalar_lea.vmem %s253, %s704
        %v706 = vld [vmem:[%s705] sm:$0xff]
        %v707 = vld [vmem:[%s705 + $0x8] sm:$0xff]
        %v708 = vld [vmem:[%s705 + $0x18] sm:$0xff]
        %v709 = vld [vmem:[%s705 + $0x20] sm:$0xff]
        %v710 = vld [vmem:[%s705 + $0x30] sm:$0xff]
        %v711 = vld [vmem:[%s705 + $0x38] sm:$0xff]
        %v712 = vld [vmem:[%s705 + $0x48] sm:$0xff]
        %v713 = vld [vmem:[%s705 + $0x50] sm:$0xff]
        %s714 = scalar_lea.vmem %s257, 12
        %v715 = vld [vmem:[%s714] sm:$0xf]
        %v717 = vsel %vm287, %v706, 0
        %v720 = vsel %vm287, %v707, 0
        %v723 = vsel %vm287, %v708, 0
        %v726 = vsel %vm287, %v709, 0
        %v729 = vsel %vm287, %v710, 0
        %v732 = vsel %vm287, %v711, 0
        %v735 = vsel %vm287, %v712, 0
        %v738 = vsel %vm287, %v713, 0
        %v741 = vsel %vm312, %v715, 0
        %743 = vmatprep.subr.mxu0 0.0
        %744 = vmatpush1.msra.mxu0 %v741
        %745 = vmatprep.subr.mxu0 0.0
        %746 = vmatpush1.msra.mxu0 0.0
        %747 = vmatprep.subr.mxu0 0.0
        %748 = vmatpush1.msra.mxu0 0.0
        %749 = vmatprep.subr.mxu0 0.0
        %750 = vmatpush1.msra.mxu0 0.0
        %751 = vmatprep.subr.mxu0 0.0
        %752 = vmatpush1.msra.mxu0 0.0
        %753 = vmatprep.subr.mxu0 0.0
        %754 = vmatpush1.msra.mxu0 0.0
        %755 = vmatprep.subr.mxu0 0.0
        %756 = vmatpush1.msra.mxu0 0.0
        %757 = vmatprep.subr.mxu0 0.0
        %758 = vmatpush1.msra.mxu0 0.0
        %759 = vmatprep.subr.mxu0 0.0
        %760 = vmatpush1.msra.mxu0 0.0
        %761 = vmatprep.subr.mxu0 0.0
        %762 = vmatpush1.msra.mxu0 0.0
        %763 = vmatprep.subr.mxu0 0.0
        %764 = vmatpush1.msra.mxu0 0.0
        %765 = vmatprep.subr.mxu0 0.0
        %766 = vmatpush1.msra.mxu0 0.0
        %767 = vmatprep.subr.mxu0 0.0
        %768 = vmatpush1.msra.mxu0 0.0
        %769 = vmatprep.subr.mxu0 0.0
        %770 = vmatpush1.msra.mxu0 0.0
        %771 = vmatprep.subr.mxu0 0.0
        %772 = vmatpush1.msra.mxu0 0.0
        %773 = vmatprep.subr.mxu0 0.0
        %774 = vmatpush1.msra.mxu0 0.0
        %775 = vmatprep.subr.mxu0 0.0
        %776 = vmatpush1.msra.mxu0 0.0
        %777 = vmatprep.subr.mxu0 0.0
        %778 = vmatpush1.msra.mxu0 0.0
        %779 = vmatprep.subr.mxu0 0.0
        %780 = vmatpush1.msra.mxu0 0.0
        %781 = vmatprep.subr.mxu0 0.0
        %782 = vmatpush1.msra.mxu0 0.0
        %783 = vmatprep.subr.mxu0 0.0
        %784 = vmatpush1.msra.mxu0 0.0
        %785 = vmatprep.subr.mxu0 0.0
        %786 = vmatpush1.msra.mxu0 0.0
        %787 = vmatprep.subr.mxu0 0.0
        %788 = vmatpush1.msra.mxu0 0.0
        %789 = vmatprep.subr.mxu0 0.0
        %790 = vmatpush1.msra.mxu0 0.0
        %791 = vmatprep.subr.mxu0 0.0
        %792 = vmatpush1.msra.mxu0 0.0
        %793 = vmatprep.subr.mxu0 0.0
        %794 = vmatpush1.msra.mxu0 0.0
        %795 = vmatprep.subr.mxu0 0.0
        %796 = vmatpush1.msra.mxu0 0.0
        %797 = vmatprep.subr.mxu0 0.0
        %798 = vmatpush1.msra.mxu0 0.0
        %799 = vmatprep.subr.mxu0 0.0
        %800 = vmatpush1.msra.mxu0 0.0
        %801 = vmatprep.subr.mxu0 0.0
        %802 = vmatpush1.msra.mxu0 0.0
        %803 = vmatprep.subr.mxu0 0.0
        %804 = vmatpush1.msra.mxu0 0.0
        %805 = vmatprep.subr.mxu0 0.0
        %806 = vmatpush1.msra.mxu0 0.0
        %807 = vmatprep.mubr.f32.mxu0 0.0
        %808 = vmatmul.mubr.f32.gmra.mrb[0].mxu0 %v717
        %v809 = vpop.f32.mrb[0].mxu0
        %v810 = vadd.f32 0.0, %v809
        %v811 = vpop.f32.mrb[0].mxu0
        %812 = vmatprep.mubr.f32.mxu0 0.0
        %813 = vmatmul.mubr.f32.gmra.mrb[0].mxu0 %v720
        %v814 = vpop.f32.mrb[0].mxu0
        %v815 = vadd.f32 0.0, %v814
        %v816 = vpop.f32.mrb[0].mxu0
        %817 = vmatprep.mubr.f32.mxu0 0.0
        %818 = vmatmul.mubr.f32.gmra.mrb[0].mxu0 %v723
        %v819 = vpop.f32.mrb[0].mxu0
        %v820 = vadd.f32 0.0, %v819
        %v821 = vpop.f32.mrb[0].mxu0
        %822 = vmatprep.mubr.f32.mxu0 0.0
        %823 = vmatmul.mubr.f32.gmra.mrb[0].mxu0 %v726
        %v824 = vpop.f32.mrb[0].mxu0
        %v825 = vadd.f32 0.0, %v824
        %v826 = vpop.f32.mrb[0].mxu0
        %827 = vmatprep.mubr.f32.mxu0 0.0
        %828 = vmatmul.mubr.f32.gmra.mrb[0].mxu0 %v729
        %v829 = vpop.f32.mrb[0].mxu0
        %v830 = vadd.f32 0.0, %v829
        %v831 = vpop.f32.mrb[0].mxu0
        %832 = vmatprep.mubr.f32.mxu0 0.0
        %833 = vmatmul.mubr.f32.gmra.mrb[0].mxu0 %v732
        %v834 = vpop.f32.mrb[0].mxu0
        %v835 = vadd.f32 0.0, %v834
        %v836 = vpop.f32.mrb[0].mxu0
        %837 = vmatprep.mubr.f32.mxu0 0.0
        %838 = vmatmul.mubr.f32.gmra.mrb[0].mxu0 %v735
        %v839 = vpop.f32.mrb[0].mxu0
        %v840 = vadd.f32 0.0, %v839
        %v841 = vpop.f32.mrb[0].mxu0
        %842 = vmatprep.mubr.f32.mxu0 0.0
        %843 = vmatmul.mubr.f32.gmra.mrb[0].mxu0 %v738
        %v844 = vpop.f32.mrb[0].mxu0
        %v845 = vadd.f32 0.0, %v844
        %v846 = vpop.f32.mrb[0].mxu0
        %847 = vdwg.mxu0
        %v848 = vadd.f32 %v695, %v810
        %v849 = vadd.f32 %v696, %v815
        %v850 = vadd.f32 %v697, %v820
        %v851 = vadd.f32 %v698, %v825
        %v852 = vadd.f32 %v699, %v830
        %v853 = vadd.f32 %v700, %v835
        %v854 = vadd.f32 %v701, %v840
        %v855 = vadd.f32 %v702, %v845
        %v856 = vld [vmem:[%s705 + $0x1] sm:$0xff]
        %v857 = vld [vmem:[%s705 + $0x9] sm:$0xff]
        %v858 = vld [vmem:[%s705 + $0x19] sm:$0xff]
        %v859 = vld [vmem:[%s705 + $0x21] sm:$0xff]
        %v860 = vld [vmem:[%s705 + $0x31] sm:$0xff]
        %v861 = vld [vmem:[%s705 + $0x39] sm:$0xff]
        %v862 = vld [vmem:[%s705 + $0x49] sm:$0xff]
        %v863 = vld [vmem:[%s705 + $0x51] sm:$0xff]
        %s864 = scalar_lea.vmem %s257, 16
        %v865 = vld [vmem:[%s864] sm:$0xf]
        %v867 = vsel %vm287, %v856, 0
        %v870 = vsel %vm287, %v857, 0
        %v873 = vsel %vm287, %v858, 0
        %v876 = vsel %vm287, %v859, 0
        %v879 = vsel %vm287, %v860, 0
        %v882 = vsel %vm287, %v861, 0
        %v885 = vsel %vm287, %v862, 0
        %v888 = vsel %vm287, %v863, 0
        %v891 = vsel %vm312, %v865, 0
        %893 = vmatprep.subr.mxu0 0.0
        %894 = vmatpush1.msra.mxu0 %v891
        %895 = vmatprep.subr.mxu0 0.0
        %896 = vmatpush1.msra.mxu0 0.0
        %897 = vmatprep.subr.mxu0 0.0
        %898 = vmatpush1.msra.mxu0 0.0
        %899 = vmatprep.subr.mxu0 0.0
        %900 = vmatpush1.msra.mxu0 0.0
        %901 = vmatprep.subr.mxu0 0.0
        %902 = vmatpush1.msra.mxu0 0.0
        %903 = vmatprep.subr.mxu0 0.0
        %904 = vmatpush1.msra.mxu0 0.0
        %905 = vmatprep.subr.mxu0 0.0
        %906 = vmatpush1.msra.mxu0 0.0
        %907 = vmatprep.subr.mxu0 0.0
        %908 = vmatpush1.msra.mxu0 0.0
        %909 = vmatprep.subr.mxu0 0.0
        %910 = vmatpush1.msra.mxu0 0.0
        %911 = vmatprep.subr.mxu0 0.0
        %912 = vmatpush1.msra.mxu0 0.0
        %913 = vmatprep.subr.mxu0 0.0
        %914 = vmatpush1.msra.mxu0 0.0
        %915 = vmatprep.subr.mxu0 0.0
        %916 = vmatpush1.msra.mxu0 0.0
        %917 = vmatprep.subr.mxu0 0.0
        %918 = vmatpush1.msra.mxu0 0.0
        %919 = vmatprep.subr.mxu0 0.0
        %920 = vmatpush1.msra.mxu0 0.0
        %921 = vmatprep.subr.mxu0 0.0
        %922 = vmatpush1.msra.mxu0 0.0
        %923 = vmatprep.subr.mxu0 0.0
        %924 = vmatpush1.msra.mxu0 0.0
        %925 = vmatprep.subr.mxu0 0.0
        %926 = vmatpush1.msra.mxu0 0.0
        %927 = vmatprep.subr.mxu0 0.0
        %928 = vmatpush1.msra.mxu0 0.0
        %929 = vmatprep.subr.mxu0 0.0
        %930 = vmatpush1.msra.mxu0 0.0
        %931 = vmatprep.subr.mxu0 0.0
        %932 = vmatpush1.msra.mxu0 0.0
        %933 = vmatprep.subr.mxu0 0.0
        %934 = vmatpush1.msra.mxu0 0.0
        %935 = vmatprep.subr.mxu0 0.0
        %936 = vmatpush1.msra.mxu0 0.0
        %937 = vmatprep.subr.mxu0 0.0
        %938 = vmatpush1.msra.mxu0 0.0
        %939 = vmatprep.subr.mxu0 0.0
        %940 = vmatpush1.msra.mxu0 0.0
        %941 = vmatprep.subr.mxu0 0.0
        %942 = vmatpush1.msra.mxu0 0.0
        %943 = vmatprep.subr.mxu0 0.0
        %944 = vmatpush1.msra.mxu0 0.0
        %945 = vmatprep.subr.mxu0 0.0
        %946 = vmatpush1.msra.mxu0 0.0
        %947 = vmatprep.subr.mxu0 0.0
        %948 = vmatpush1.msra.mxu0 0.0
        %949 = vmatprep.subr.mxu0 0.0
        %950 = vmatpush1.msra.mxu0 0.0
        %951 = vmatprep.subr.mxu0 0.0
        %952 = vmatpush1.msra.mxu0 0.0
        %953 = vmatprep.subr.mxu0 0.0
        %954 = vmatpush1.msra.mxu0 0.0
        %955 = vmatprep.subr.mxu0 0.0
        %956 = vmatpush1.msra.mxu0 0.0
        %957 = vmatprep.mubr.f32.mxu0 0.0
        %958 = vmatmul.mubr.f32.gmra.mrb[0].mxu0 %v867
        %v959 = vpop.f32.mrb[0].mxu0
        %v960 = vadd.f32 0.0, %v959
        %v961 = vpop.f32.mrb[0].mxu0
        %962 = vmatprep.mubr.f32.mxu0 0.0
        %963 = vmatmul.mubr.f32.gmra.mrb[0].mxu0 %v870
        %v964 = vpop.f32.mrb[0].mxu0
        %v965 = vadd.f32 0.0, %v964
        %v966 = vpop.f32.mrb[0].mxu0
        %967 = vmatprep.mubr.f32.mxu0 0.0
        %968 = vmatmul.mubr.f32.gmra.mrb[0].mxu0 %v873
        %v969 = vpop.f32.mrb[0].mxu0
        %v970 = vadd.f32 0.0, %v969
        %v971 = vpop.f32.mrb[0].mxu0
        %972 = vmatprep.mubr.f32.mxu0 0.0
        %973 = vmatmul.mubr.f32.gmra.mrb[0].mxu0 %v876
        %v974 = vpop.f32.mrb[0].mxu0
        %v975 = vadd.f32 0.0, %v974
        %v976 = vpop.f32.mrb[0].mxu0
        %977 = vmatprep.mubr.f32.mxu0 0.0
        %978 = vmatmul.mubr.f32.gmra.mrb[0].mxu0 %v879
        %v979 = vpop.f32.mrb[0].mxu0
        %v980 = vadd.f32 0.0, %v979
        %v981 = vpop.f32.mrb[0].mxu0
        %982 = vmatprep.mubr.f32.mxu0 0.0
        %983 = vmatmul.mubr.f32.gmra.mrb[0].mxu0 %v882
        %v984 = vpop.f32.mrb[0].mxu0
        %v985 = vadd.f32 0.0, %v984
        %v986 = vpop.f32.mrb[0].mxu0
        %987 = vmatprep.mubr.f32.mxu0 0.0
        %988 = vmatmul.mubr.f32.gmra.mrb[0].mxu0 %v885
        %v989 = vpop.f32.mrb[0].mxu0
        %v990 = vadd.f32 0.0, %v989
        %v991 = vpop.f32.mrb[0].mxu0
        %992 = vmatprep.mubr.f32.mxu0 0.0
        %993 = vmatmul.mubr.f32.gmra.mrb[0].mxu0 %v888
        %v994 = vpop.f32.mrb[0].mxu0
        %v995 = vadd.f32 0.0, %v994
        %v996 = vpop.f32.mrb[0].mxu0
        %997 = vdwg.mxu0
        %v998 = vadd.f32 %v848, %v960
        %v999 = vadd.f32 %v849, %v965
        %v1000 = vadd.f32 %v850, %v970
        %v1001 = vadd.f32 %v851, %v975
        %v1002 = vadd.f32 %v852, %v980
        %v1003 = vadd.f32 %v853, %v985
        %v1004 = vadd.f32 %v854, %v990
        %v1005 = vadd.f32 %v855, %v995
        %v1006 = vld [vmem:[%s705 + $0x2] sm:$0xff]
        %v1007 = vld [vmem:[%s705 + $0xa] sm:$0xff]
        %v1008 = vld [vmem:[%s705 + $0x1a] sm:$0xff]
        %v1009 = vld [vmem:[%s705 + $0x22] sm:$0xff]
        %v1010 = vld [vmem:[%s705 + $0x32] sm:$0xff]
        %v1011 = vld [vmem:[%s705 + $0x3a] sm:$0xff]
        %v1012 = vld [vmem:[%s705 + $0x4a] sm:$0xff]
        %v1013 = vld [vmem:[%s705 + $0x52] sm:$0xff]
        %s1014 = scalar_lea.vmem %s257, 20
        %v1015 = vld [vmem:[%s1014] sm:$0xf]
        %v1017 = vsel %vm287, %v1006, 0
        %v1020 = vsel %vm287, %v1007, 0
        %v1023 = vsel %vm287, %v1008, 0
        %v1026 = vsel %vm287, %v1009, 0
        %v1029 = vsel %vm287, %v1010, 0
        %v1032 = vsel %vm287, %v1011, 0
        %v1035 = vsel %vm287, %v1012, 0
        %v1038 = vsel %vm287, %v1013, 0
        %v1041 = vsel %vm312, %v1015, 0
        %1043 = vmatprep.subr.mxu0 0.0
        %1044 = vmatpush1.msra.mxu0 %v1041
        %1045 = vmatprep.subr.mxu0 0.0
        %1046 = vmatpush1.msra.mxu0 0.0
        %1047 = vmatprep.subr.mxu0 0.0
        %1048 = vmatpush1.msra.mxu0 0.0
        %1049 = vmatprep.subr.mxu0 0.0
        %1050 = vmatpush1.msra.mxu0 0.0
        %1051 = vmatprep.subr.mxu0 0.0
        %1052 = vmatpush1.msra.mxu0 0.0
        %1053 = vmatprep.subr.mxu0 0.0
        %1054 = vmatpush1.msra.mxu0 0.0
        %1055 = vmatprep.subr.mxu0 0.0
        %1056 = vmatpush1.msra.mxu0 0.0
        %1057 = vmatprep.subr.mxu0 0.0
        %1058 = vmatpush1.msra.mxu0 0.0
        %1059 = vmatprep.subr.mxu0 0.0
        %1060 = vmatpush1.msra.mxu0 0.0
        %1061 = vmatprep.subr.mxu0 0.0
        %1062 = vmatpush1.msra.mxu0 0.0
        %1063 = vmatprep.subr.mxu0 0.0
        %1064 = vmatpush1.msra.mxu0 0.0
        %1065 = vmatprep.subr.mxu0 0.0
        %1066 = vmatpush1.msra.mxu0 0.0
        %1067 = vmatprep.subr.mxu0 0.0
        %1068 = vmatpush1.msra.mxu0 0.0
        %1069 = vmatprep.subr.mxu0 0.0
        %1070 = vmatpush1.msra.mxu0 0.0
        %1071 = vmatprep.subr.mxu0 0.0
        %1072 = vmatpush1.msra.mxu0 0.0
        %1073 = vmatprep.subr.mxu0 0.0
        %1074 = vmatpush1.msra.mxu0 0.0
        %1075 = vmatprep.subr.mxu0 0.0
        %1076 = vmatpush1.msra.mxu0 0.0
        %1077 = vmatprep.subr.mxu0 0.0
        %1078 = vmatpush1.msra.mxu0 0.0
        %1079 = vmatprep.subr.mxu0 0.0
        %1080 = vmatpush1.msra.mxu0 0.0
        %1081 = vmatprep.subr.mxu0 0.0
        %1082 = vmatpush1.msra.mxu0 0.0
        %1083 = vmatprep.subr.mxu0 0.0
        %1084 = vmatpush1.msra.mxu0 0.0
        %1085 = vmatprep.subr.mxu0 0.0
        %1086 = vmatpush1.msra.mxu0 0.0
        %1087 = vmatprep.subr.mxu0 0.0
        %1088 = vmatpush1.msra.mxu0 0.0
        %1089 = vmatprep.subr.mxu0 0.0
        %1090 = vmatpush1.msra.mxu0 0.0
        %1091 = vmatprep.subr.mxu0 0.0
        %1092 = vmatpush1.msra.mxu0 0.0
        %1093 = vmatprep.subr.mxu0 0.0
        %1094 = vmatpush1.msra.mxu0 0.0
        %1095 = vmatprep.subr.mxu0 0.0
        %1096 = vmatpush1.msra.mxu0 0.0
        %1097 = vmatprep.subr.mxu0 0.0
        %1098 = vmatpush1.msra.mxu0 0.0
        %1099 = vmatprep.subr.mxu0 0.0
        %1100 = vmatpush1.msra.mxu0 0.0
        %1101 = vmatprep.subr.mxu0 0.0
        %1102 = vmatpush1.msra.mxu0 0.0
        %1103 = vmatprep.subr.mxu0 0.0
        %1104 = vmatpush1.msra.mxu0 0.0
        %1105 = vmatprep.subr.mxu0 0.0
        %1106 = vmatpush1.msra.mxu0 0.0
        %1107 = vmatprep.mubr.f32.mxu0 0.0
        %1108 = vmatmul.mubr.f32.gmra.mrb[0].mxu0 %v1017
        %v1109 = vpop.f32.mrb[0].mxu0
        %v1110 = vadd.f32 0.0, %v1109
        %v1111 = vpop.f32.mrb[0].mxu0
        %1112 = vmatprep.mubr.f32.mxu0 0.0
        %1113 = vmatmul.mubr.f32.gmra.mrb[0].mxu0 %v1020
        %v1114 = vpop.f32.mrb[0].mxu0
        %v1115 = vadd.f32 0.0, %v1114
        %v1116 = vpop.f32.mrb[0].mxu0
        %1117 = vmatprep.mubr.f32.mxu0 0.0
        %1118 = vmatmul.mubr.f32.gmra.mrb[0].mxu0 %v1023
        %v1119 = vpop.f32.mrb[0].mxu0
        %v1120 = vadd.f32 0.0, %v1119
        %v1121 = vpop.f32.mrb[0].mxu0
        %1122 = vmatprep.mubr.f32.mxu0 0.0
        %1123 = vmatmul.mubr.f32.gmra.mrb[0].mxu0 %v1026
        %v1124 = vpop.f32.mrb[0].mxu0
        %v1125 = vadd.f32 0.0, %v1124
        %v1126 = vpop.f32.mrb[0].mxu0
        %1127 = vmatprep.mubr.f32.mxu0 0.0
        %1128 = vmatmul.mubr.f32.gmra.mrb[0].mxu0 %v1029
        %v1129 = vpop.f32.mrb[0].mxu0
        %v1130 = vadd.f32 0.0, %v1129
        %v1131 = vpop.f32.mrb[0].mxu0
        %1132 = vmatprep.mubr.f32.mxu0 0.0
        %1133 = vmatmul.mubr.f32.gmra.mrb[0].mxu0 %v1032
        %v1134 = vpop.f32.mrb[0].mxu0
        %v1135 = vadd.f32 0.0, %v1134
        %v1136 = vpop.f32.mrb[0].mxu0
        %1137 = vmatprep.mubr.f32.mxu0 0.0
        %1138 = vmatmul.mubr.f32.gmra.mrb[0].mxu0 %v1035
        %v1139 = vpop.f32.mrb[0].mxu0
        %v1140 = vadd.f32 0.0, %v1139
        %v1141 = vpop.f32.mrb[0].mxu0
        %1142 = vmatprep.mubr.f32.mxu0 0.0
        %1143 = vmatmul.mubr.f32.gmra.mrb[0].mxu0 %v1038
        %v1144 = vpop.f32.mrb[0].mxu0
        %v1145 = vadd.f32 0.0, %v1144
        %v1146 = vpop.f32.mrb[0].mxu0
        %1147 = vdwg.mxu0
        %v1148 = vadd.f32 %v998, %v1110
        %v1149 = vadd.f32 %v999, %v1115
        %v1150 = vadd.f32 %v1000, %v1120
        %v1151 = vadd.f32 %v1001, %v1125
        %v1152 = vadd.f32 %v1002, %v1130
        %v1153 = vadd.f32 %v1003, %v1135
        %v1154 = vadd.f32 %v1004, %v1140
        %v1155 = vadd.f32 %v1005, %v1145
        %s1156 = sadd.s32 %s265, 2
        %s1157 = smul.u32 %s1156, 24
        %s1158 = scalar_lea.vmem %s253, %s1157
        %v1159 = vld [vmem:[%s1158] sm:$0xff]
        %v1160 = vld [vmem:[%s1158 + $0x8] sm:$0xff]
        %v1161 = vld [vmem:[%s1158 + $0x18] sm:$0xff]
        %v1162 = vld [vmem:[%s1158 + $0x20] sm:$0xff]
        %v1163 = vld [vmem:[%s1158 + $0x30] sm:$0xff]
        %v1164 = vld [vmem:[%s1158 + $0x38] sm:$0xff]
        %v1165 = vld [vmem:[%s1158 + $0x48] sm:$0xff]
        %v1166 = vld [vmem:[%s1158 + $0x50] sm:$0xff]
        %s1167 = scalar_lea.vmem %s257, 24
        %v1168 = vld [vmem:[%s1167] sm:$0xf]
        %v1170 = vsel %vm287, %v1159, 0
        %v1173 = vsel %vm287, %v1160, 0
        %v1176 = vsel %vm287, %v1161, 0
        %v1179 = vsel %vm287, %v1162, 0
        %v1182 = vsel %vm287, %v1163, 0
        %v1185 = vsel %vm287, %v1164, 0
        %v1188 = vsel %vm287, %v1165, 0
        %v1191 = vsel %vm287, %v1166, 0
        %v1194 = vsel %vm312, %v1168, 0
        %1196 = vmatprep.subr.mxu0 0.0
        %1197 = vmatpush1.msra.mxu0 %v1194
        %1198 = vmatprep.subr.mxu0 0.0
        %1199 = vmatpush1.msra.mxu0 0.0
        %1200 = vmatprep.subr.mxu0 0.0
        %1201 = vmatpush1.msra.mxu0 0.0
        %1202 = vmatprep.subr.mxu0 0.0
        %1203 = vmatpush1.msra.mxu0 0.0
        %1204 = vmatprep.subr.mxu0 0.0
        %1205 = vmatpush1.msra.mxu0 0.0
        %1206 = vmatprep.subr.mxu0 0.0
        %1207 = vmatpush1.msra.mxu0 0.0
        %1208 = vmatprep.subr.mxu0 0.0
        %1209 = vmatpush1.msra.mxu0 0.0
        %1210 = vmatprep.subr.mxu0 0.0
        %1211 = vmatpush1.msra.mxu0 0.0
        %1212 = vmatprep.subr.mxu0 0.0
        %1213 = vmatpush1.msra.mxu0 0.0
        %1214 = vmatprep.subr.mxu0 0.0
        %1215 = vmatpush1.msra.mxu0 0.0
        %1216 = vmatprep.subr.mxu0 0.0
        %1217 = vmatpush1.msra.mxu0 0.0
        %1218 = vmatprep.subr.mxu0 0.0
        %1219 = vmatpush1.msra.mxu0 0.0
        %1220 = vmatprep.subr.mxu0 0.0
        %1221 = vmatpush1.msra.mxu0 0.0
        %1222 = vmatprep.subr.mxu0 0.0
        %1223 = vmatpush1.msra.mxu0 0.0
        %1224 = vmatprep.subr.mxu0 0.0
        %1225 = vmatpush1.msra.mxu0 0.0
        %1226 = vmatprep.subr.mxu0 0.0
        %1227 = vmatpush1.msra.mxu0 0.0
        %1228 = vmatprep.subr.mxu0 0.0
        %1229 = vmatpush1.msra.mxu0 0.0
        %1230 = vmatprep.subr.mxu0 0.0
        %1231 = vmatpush1.msra.mxu0 0.0
        %1232 = vmatprep.subr.mxu0 0.0
        %1233 = vmatpush1.msra.mxu0 0.0
        %1234 = vmatprep.subr.mxu0 0.0
        %1235 = vmatpush1.msra.mxu0 0.0
        %1236 = vmatprep.subr.mxu0 0.0
        %1237 = vmatpush1.msra.mxu0 0.0
        %1238 = vmatprep.subr.mxu0 0.0
        %1239 = vmatpush1.msra.mxu0 0.0
        %1240 = vmatprep.subr.mxu0 0.0
        %1241 = vmatpush1.msra.mxu0 0.0
        %1242 = vmatprep.subr.mxu0 0.0
        %1243 = vmatpush1.msra.mxu0 0.0
        %1244 = vmatprep.subr.mxu0 0.0
        %1245 = vmatpush1.msra.mxu0 0.0
        %1246 = vmatprep.subr.mxu0 0.0
        %1247 = vmatpush1.msra.mxu0 0.0
        %1248 = vmatprep.subr.mxu0 0.0
        %1249 = vmatpush1.msra.mxu0 0.0
        %1250 = vmatprep.subr.mxu0 0.0
        %1251 = vmatpush1.msra.mxu0 0.0
        %1252 = vmatprep.subr.mxu0 0.0
        %1253 = vmatpush1.msra.mxu0 0.0
        %1254 = vmatprep.subr.mxu0 0.0
        %1255 = vmatpush1.msra.mxu0 0.0
        %1256 = vmatprep.subr.mxu0 0.0
        %1257 = vmatpush1.msra.mxu0 0.0
        %1258 = vmatprep.subr.mxu0 0.0
        %1259 = vmatpush1.msra.mxu0 0.0
        %1260 = vmatprep.mubr.f32.mxu0 0.0
        %1261 = vmatmul.mubr.f32.gmra.mrb[0].mxu0 %v1170
        %v1262 = vpop.f32.mrb[0].mxu0
        %v1263 = vadd.f32 0.0, %v1262
        %v1264 = vpop.f32.mrb[0].mxu0
        %1265 = vmatprep.mubr.f32.mxu0 0.0
        %1266 = vmatmul.mubr.f32.gmra.mrb[0].mxu0 %v1173
        %v1267 = vpop.f32.mrb[0].mxu0
        %v1268 = vadd.f32 0.0, %v1267
        %v1269 = vpop.f32.mrb[0].mxu0
        %1270 = vmatprep.mubr.f32.mxu0 0.0
        %1271 = vmatmul.mubr.f32.gmra.mrb[0].mxu0 %v1176
        %v1272 = vpop.f32.mrb[0].mxu0
        %v1273 = vadd.f32 0.0, %v1272
        %v1274 = vpop.f32.mrb[0].mxu0
        %1275 = vmatprep.mubr.f32.mxu0 0.0
        %1276 = vmatmul.mubr.f32.gmra.mrb[0].mxu0 %v1179
        %v1277 = vpop.f32.mrb[0].mxu0
        %v1278 = vadd.f32 0.0, %v1277
        %v1279 = vpop.f32.mrb[0].mxu0
        %1280 = vmatprep.mubr.f32.mxu0 0.0
        %1281 = vmatmul.mubr.f32.gmra.mrb[0].mxu0 %v1182
        %v1282 = vpop.f32.mrb[0].mxu0
        %v1283 = vadd.f32 0.0, %v1282
        %v1284 = vpop.f32.mrb[0].mxu0
        %1285 = vmatprep.mubr.f32.mxu0 0.0
        %1286 = vmatmul.mubr.f32.gmra.mrb[0].mxu0 %v1185
        %v1287 = vpop.f32.mrb[0].mxu0
        %v1288 = vadd.f32 0.0, %v1287
        %v1289 = vpop.f32.mrb[0].mxu0
        %1290 = vmatprep.mubr.f32.mxu0 0.0
        %1291 = vmatmul.mubr.f32.gmra.mrb[0].mxu0 %v1188
        %v1292 = vpop.f32.mrb[0].mxu0
        %v1293 = vadd.f32 0.0, %v1292
        %v1294 = vpop.f32.mrb[0].mxu0
        %1295 = vmatprep.mubr.f32.mxu0 0.0
        %1296 = vmatmul.mubr.f32.gmra.mrb[0].mxu0 %v1191
        %v1297 = vpop.f32.mrb[0].mxu0
        %v1298 = vadd.f32 0.0, %v1297
        %v1299 = vpop.f32.mrb[0].mxu0
        %1300 = vdwg.mxu0
        %v1301 = vadd.f32 %v1148, %v1263
        %v1302 = vadd.f32 %v1149, %v1268
        %v1303 = vadd.f32 %v1150, %v1273
        %v1304 = vadd.f32 %v1151, %v1278
        %v1305 = vadd.f32 %v1152, %v1283
        %v1306 = vadd.f32 %v1153, %v1288
        %v1307 = vadd.f32 %v1154, %v1293
        %v1308 = vadd.f32 %v1155, %v1298
        %v1309 = vld [vmem:[%s1158 + $0x1] sm:$0xff]
        %v1310 = vld [vmem:[%s1158 + $0x9] sm:$0xff]
        %v1311 = vld [vmem:[%s1158 + $0x19] sm:$0xff]
        %v1312 = vld [vmem:[%s1158 + $0x21] sm:$0xff]
        %v1313 = vld [vmem:[%s1158 + $0x31] sm:$0xff]
        %v1314 = vld [vmem:[%s1158 + $0x39] sm:$0xff]
        %v1315 = vld [vmem:[%s1158 + $0x49] sm:$0xff]
        %v1316 = vld [vmem:[%s1158 + $0x51] sm:$0xff]
        %s1317 = scalar_lea.vmem %s257, 28
        %v1318 = vld [vmem:[%s1317] sm:$0xf]
        %v1320 = vsel %vm287, %v1309, 0
        %v1323 = vsel %vm287, %v1310, 0
        %v1326 = vsel %vm287, %v1311, 0
        %v1329 = vsel %vm287, %v1312, 0
        %v1332 = vsel %vm287, %v1313, 0
        %v1335 = vsel %vm287, %v1314, 0
        %v1338 = vsel %vm287, %v1315, 0
        %v1341 = vsel %vm287, %v1316, 0
        %v1344 = vsel %vm312, %v1318, 0
        %1346 = vmatprep.subr.mxu0 0.0
        %1347 = vmatpush1.msra.mxu0 %v1344
        %1348 = vmatprep.subr.mxu0 0.0
        %1349 = vmatpush1.msra.mxu0 0.0
        %1350 = vmatprep.subr.mxu0 0.0
        %1351 = vmatpush1.msra.mxu0 0.0
        %1352 = vmatprep.subr.mxu0 0.0
        %1353 = vmatpush1.msra.mxu0 0.0
        %1354 = vmatprep.subr.mxu0 0.0
        %1355 = vmatpush1.msra.mxu0 0.0
        %1356 = vmatprep.subr.mxu0 0.0
        %1357 = vmatpush1.msra.mxu0 0.0
        %1358 = vmatprep.subr.mxu0 0.0
        %1359 = vmatpush1.msra.mxu0 0.0
        %1360 = vmatprep.subr.mxu0 0.0
        %1361 = vmatpush1.msra.mxu0 0.0
        %1362 = vmatprep.subr.mxu0 0.0
        %1363 = vmatpush1.msra.mxu0 0.0
        %1364 = vmatprep.subr.mxu0 0.0
        %1365 = vmatpush1.msra.mxu0 0.0
        %1366 = vmatprep.subr.mxu0 0.0
        %1367 = vmatpush1.msra.mxu0 0.0
        %1368 = vmatprep.subr.mxu0 0.0
        %1369 = vmatpush1.msra.mxu0 0.0
        %1370 = vmatprep.subr.mxu0 0.0
        %1371 = vmatpush1.msra.mxu0 0.0
        %1372 = vmatprep.subr.mxu0 0.0
        %1373 = vmatpush1.msra.mxu0 0.0
        %1374 = vmatprep.subr.mxu0 0.0
        %1375 = vmatpush1.msra.mxu0 0.0
        %1376 = vmatprep.subr.mxu0 0.0
        %1377 = vmatpush1.msra.mxu0 0.0
        %1378 = vmatprep.subr.mxu0 0.0
        %1379 = vmatpush1.msra.mxu0 0.0
        %1380 = vmatprep.subr.mxu0 0.0
        %1381 = vmatpush1.msra.mxu0 0.0
        %1382 = vmatprep.subr.mxu0 0.0
        %1383 = vmatpush1.msra.mxu0 0.0
        %1384 = vmatprep.subr.mxu0 0.0
        %1385 = vmatpush1.msra.mxu0 0.0
        %1386 = vmatprep.subr.mxu0 0.0
        %1387 = vmatpush1.msra.mxu0 0.0
        %1388 = vmatprep.subr.mxu0 0.0
        %1389 = vmatpush1.msra.mxu0 0.0
        %1390 = vmatprep.subr.mxu0 0.0
        %1391 = vmatpush1.msra.mxu0 0.0
        %1392 = vmatprep.subr.mxu0 0.0
        %1393 = vmatpush1.msra.mxu0 0.0
        %1394 = vmatprep.subr.mxu0 0.0
        %1395 = vmatpush1.msra.mxu0 0.0
        %1396 = vmatprep.subr.mxu0 0.0
        %1397 = vmatpush1.msra.mxu0 0.0
        %1398 = vmatprep.subr.mxu0 0.0
        %1399 = vmatpush1.msra.mxu0 0.0
        %1400 = vmatprep.subr.mxu0 0.0
        %1401 = vmatpush1.msra.mxu0 0.0
        %1402 = vmatprep.subr.mxu0 0.0
        %1403 = vmatpush1.msra.mxu0 0.0
        %1404 = vmatprep.subr.mxu0 0.0
        %1405 = vmatpush1.msra.mxu0 0.0
        %1406 = vmatprep.subr.mxu0 0.0
        %1407 = vmatpush1.msra.mxu0 0.0
        %1408 = vmatprep.subr.mxu0 0.0
        %1409 = vmatpush1.msra.mxu0 0.0
        %1410 = vmatprep.mubr.f32.mxu0 0.0
        %1411 = vmatmul.mubr.f32.gmra.mrb[0].mxu0 %v1320
        %v1412 = vpop.f32.mrb[0].mxu0
        %v1413 = vadd.f32 0.0, %v1412
        %v1414 = vpop.f32.mrb[0].mxu0
        %1415 = vmatprep.mubr.f32.mxu0 0.0
        %1416 = vmatmul.mubr.f32.gmra.mrb[0].mxu0 %v1323
        %v1417 = vpop.f32.mrb[0].mxu0
        %v1418 = vadd.f32 0.0, %v1417
        %v1419 = vpop.f32.mrb[0].mxu0
        %1420 = vmatprep.mubr.f32.mxu0 0.0
        %1421 = vmatmul.mubr.f32.gmra.mrb[0].mxu0 %v1326
        %v1422 = vpop.f32.mrb[0].mxu0
        %v1423 = vadd.f32 0.0, %v1422
        %v1424 = vpop.f32.mrb[0].mxu0
        %1425 = vmatprep.mubr.f32.mxu0 0.0
        %1426 = vmatmul.mubr.f32.gmra.mrb[0].mxu0 %v1329
        %v1427 = vpop.f32.mrb[0].mxu0
        %v1428 = vadd.f32 0.0, %v1427
        %v1429 = vpop.f32.mrb[0].mxu0
        %1430 = vmatprep.mubr.f32.mxu0 0.0
        %1431 = vmatmul.mubr.f32.gmra.mrb[0].mxu0 %v1332
        %v1432 = vpop.f32.mrb[0].mxu0
        %v1433 = vadd.f32 0.0, %v1432
        %v1434 = vpop.f32.mrb[0].mxu0
        %1435 = vmatprep.mubr.f32.mxu0 0.0
        %1436 = vmatmul.mubr.f32.gmra.mrb[0].mxu0 %v1335
        %v1437 = vpop.f32.mrb[0].mxu0
        %v1438 = vadd.f32 0.0, %v1437
        %v1439 = vpop.f32.mrb[0].mxu0
        %1440 = vmatprep.mubr.f32.mxu0 0.0
        %1441 = vmatmul.mubr.f32.gmra.mrb[0].mxu0 %v1338
        %v1442 = vpop.f32.mrb[0].mxu0
        %v1443 = vadd.f32 0.0, %v1442
        %v1444 = vpop.f32.mrb[0].mxu0
        %1445 = vmatprep.mubr.f32.mxu0 0.0
        %1446 = vmatmul.mubr.f32.gmra.mrb[0].mxu0 %v1341
        %v1447 = vpop.f32.mrb[0].mxu0
        %v1448 = vadd.f32 0.0, %v1447
        %v1449 = vpop.f32.mrb[0].mxu0
        %1450 = vdwg.mxu0
        %v1451 = vadd.f32 %v1301, %v1413
        %v1452 = vadd.f32 %v1302, %v1418
        %v1453 = vadd.f32 %v1303, %v1423
        %v1454 = vadd.f32 %v1304, %v1428
        %v1455 = vadd.f32 %v1305, %v1433
        %v1456 = vadd.f32 %v1306, %v1438
        %v1457 = vadd.f32 %v1307, %v1443
        %v1458 = vadd.f32 %v1308, %v1448
        %v1459 = vld [vmem:[%s1158 + $0x2] sm:$0xff]
        %v1460 = vld [vmem:[%s1158 + $0xa] sm:$0xff]
        %v1461 = vld [vmem:[%s1158 + $0x1a] sm:$0xff]
        %v1462 = vld [vmem:[%s1158 + $0x22] sm:$0xff]
        %v1463 = vld [vmem:[%s1158 + $0x32] sm:$0xff]
        %v1464 = vld [vmem:[%s1158 + $0x3a] sm:$0xff]
        %v1465 = vld [vmem:[%s1158 + $0x4a] sm:$0xff]
        %v1466 = vld [vmem:[%s1158 + $0x52] sm:$0xff]
        %s1467 = scalar_lea.vmem %s257, 32
        %v1468 = vld [vmem:[%s1467] sm:$0xf]
        %v1470 = vsel %vm287, %v1459, 0
        %v1473 = vsel %vm287, %v1460, 0
        %v1476 = vsel %vm287, %v1461, 0
        %v1479 = vsel %vm287, %v1462, 0
        %v1482 = vsel %vm287, %v1463, 0
        %v1485 = vsel %vm287, %v1464, 0
        %v1488 = vsel %vm287, %v1465, 0
        %v1491 = vsel %vm287, %v1466, 0
        %v1494 = vsel %vm312, %v1468, 0
        %1496 = vmatprep.subr.mxu0 0.0
        %1497 = vmatpush1.msra.mxu0 %v1494
        %1498 = vmatprep.subr.mxu0 0.0
        %1499 = vmatpush1.msra.mxu0 0.0
        %1500 = vmatprep.subr.mxu0 0.0
        %1501 = vmatpush1.msra.mxu0 0.0
        %1502 = vmatprep.subr.mxu0 0.0
        %1503 = vmatpush1.msra.mxu0 0.0
        %1504 = vmatprep.subr.mxu0 0.0
        %1505 = vmatpush1.msra.mxu0 0.0
        %1506 = vmatprep.subr.mxu0 0.0
        %1507 = vmatpush1.msra.mxu0 0.0
        %1508 = vmatprep.subr.mxu0 0.0
        %1509 = vmatpush1.msra.mxu0 0.0
        %1510 = vmatprep.subr.mxu0 0.0
        %1511 = vmatpush1.msra.mxu0 0.0
        %1512 = vmatprep.subr.mxu0 0.0
        %1513 = vmatpush1.msra.mxu0 0.0
        %1514 = vmatprep.subr.mxu0 0.0
        %1515 = vmatpush1.msra.mxu0 0.0
        %1516 = vmatprep.subr.mxu0 0.0
        %1517 = vmatpush1.msra.mxu0 0.0
        %1518 = vmatprep.subr.mxu0 0.0
        %1519 = vmatpush1.msra.mxu0 0.0
        %1520 = vmatprep.subr.mxu0 0.0
        %1521 = vmatpush1.msra.mxu0 0.0
        %1522 = vmatprep.subr.mxu0 0.0
        %1523 = vmatpush1.msra.mxu0 0.0
        %1524 = vmatprep.subr.mxu0 0.0
        %1525 = vmatpush1.msra.mxu0 0.0
        %1526 = vmatprep.subr.mxu0 0.0
        %1527 = vmatpush1.msra.mxu0 0.0
        %1528 = vmatprep.subr.mxu0 0.0
        %1529 = vmatpush1.msra.mxu0 0.0
        %1530 = vmatprep.subr.mxu0 0.0
        %1531 = vmatpush1.msra.mxu0 0.0
        %1532 = vmatprep.subr.mxu0 0.0
        %1533 = vmatpush1.msra.mxu0 0.0
        %1534 = vmatprep.subr.mxu0 0.0
        %1535 = vmatpush1.msra.mxu0 0.0
        %1536 = vmatprep.subr.mxu0 0.0
        %1537 = vmatpush1.msra.mxu0 0.0
        %1538 = vmatprep.subr.mxu0 0.0
        %1539 = vmatpush1.msra.mxu0 0.0
        %1540 = vmatprep.subr.mxu0 0.0
        %1541 = vmatpush1.msra.mxu0 0.0
        %1542 = vmatprep.subr.mxu0 0.0
        %1543 = vmatpush1.msra.mxu0 0.0
        %1544 = vmatprep.subr.mxu0 0.0
        %1545 = vmatpush1.msra.mxu0 0.0
        %1546 = vmatprep.subr.mxu0 0.0
        %1547 = vmatpush1.msra.mxu0 0.0
        %1548 = vmatprep.subr.mxu0 0.0
        %1549 = vmatpush1.msra.mxu0 0.0
        %1550 = vmatprep.subr.mxu0 0.0
        %1551 = vmatpush1.msra.mxu0 0.0
        %1552 = vmatprep.subr.mxu0 0.0
        %1553 = vmatpush1.msra.mxu0 0.0
        %1554 = vmatprep.subr.mxu0 0.0
        %1555 = vmatpush1.msra.mxu0 0.0
        %1556 = vmatprep.subr.mxu0 0.0
        %1557 = vmatpush1.msra.mxu0 0.0
        %1558 = vmatprep.subr.mxu0 0.0
        %1559 = vmatpush1.msra.mxu0 0.0
        %1560 = vmatprep.mubr.f32.mxu0 0.0
        %1561 = vmatmul.mubr.f32.gmra.mrb[0].mxu0 %v1470
        %v1562 = vpop.f32.mrb[0].mxu0
        %v1563 = vadd.f32 0.0, %v1562
        %v1564 = vpop.f32.mrb[0].mxu0
        %1565 = vmatprep.mubr.f32.mxu0 0.0
        %1566 = vmatmul.mubr.f32.gmra.mrb[0].mxu0 %v1473
        %v1567 = vpop.f32.mrb[0].mxu0
        %v1568 = vadd.f32 0.0, %v1567
        %v1569 = vpop.f32.mrb[0].mxu0
        %1570 = vmatprep.mubr.f32.mxu0 0.0
        %1571 = vmatmul.mubr.f32.gmra.mrb[0].mxu0 %v1476
        %v1572 = vpop.f32.mrb[0].mxu0
        %v1573 = vadd.f32 0.0, %v1572
        %v1574 = vpop.f32.mrb[0].mxu0
        %1575 = vmatprep.mubr.f32.mxu0 0.0
        %1576 = vmatmul.mubr.f32.gmra.mrb[0].mxu0 %v1479
        %v1577 = vpop.f32.mrb[0].mxu0
        %v1578 = vadd.f32 0.0, %v1577
        %v1579 = vpop.f32.mrb[0].mxu0
        %1580 = vmatprep.mubr.f32.mxu0 0.0
        %1581 = vmatmul.mubr.f32.gmra.mrb[0].mxu0 %v1482
        %v1582 = vpop.f32.mrb[0].mxu0
        %v1583 = vadd.f32 0.0, %v1582
        %v1584 = vpop.f32.mrb[0].mxu0
        %1585 = vmatprep.mubr.f32.mxu0 0.0
        %1586 = vmatmul.mubr.f32.gmra.mrb[0].mxu0 %v1485
        %v1587 = vpop.f32.mrb[0].mxu0
        %v1588 = vadd.f32 0.0, %v1587
        %v1589 = vpop.f32.mrb[0].mxu0
        %1590 = vmatprep.mubr.f32.mxu0 0.0
        %1591 = vmatmul.mubr.f32.gmra.mrb[0].mxu0 %v1488
        %v1592 = vpop.f32.mrb[0].mxu0
        %v1593 = vadd.f32 0.0, %v1592
        %v1594 = vpop.f32.mrb[0].mxu0
        %1595 = vmatprep.mubr.f32.mxu0 0.0
        %1596 = vmatmul.mubr.f32.gmra.mrb[0].mxu0 %v1491
        %v1597 = vpop.f32.mrb[0].mxu0
        %v1598 = vadd.f32 0.0, %v1597
        %v1599 = vpop.f32.mrb[0].mxu0
        %1600 = vdwg.mxu0
        %v1601 = vadd.f32 %v1451, %v1563
        %v1602 = vadd.f32 %v1452, %v1568
        %v1603 = vadd.f32 %v1453, %v1573
        %v1604 = vadd.f32 %v1454, %v1578
        %v1605 = vadd.f32 %v1455, %v1583
        %v1606 = vadd.f32 %v1456, %v1588
        %v1607 = vadd.f32 %v1457, %v1593
        %v1608 = vadd.f32 %v1458, %v1598
        %v1609 = vld [vmem:[%s260] sm:$0x1]
        %v1611 = vlaneseq
        %v1612 = vshrl.u32 %v1611, 7
        %v1613 = vsub.s32 0, %v1612
        %v1614 = vrot.slane %v1609, %v1613
        %v1616 = vmul.f32 %v1601, %v1614
        %v1617 = vmul.f32 %v1602, %v1614
        %v1618 = vmul.f32 %v1603, %v1614
        %v1619 = vmul.f32 %v1604, %v1614
        %v1620 = vmul.f32 %v1605, %v1614
        %v1621 = vmul.f32 %v1606, %v1614
        %v1622 = vmul.f32 %v1607, %v1614
        %v1623 = vmul.f32 %v1608, %v1614
        %v1624 = vld [vmem:[%s263] sm:$0x1]
        %v1626 = vlaneseq
        %v1627 = vshrl.u32 %v1626, 7
        %v1628 = vsub.s32 0, %v1627
        %v1629 = vrot.slane %v1624, %v1628
        %v1631 = vadd.f32 %v1616, %v1629
        %v1632 = vadd.f32 %v1617, %v1629
        %v1633 = vadd.f32 %v1618, %v1629
        %v1634 = vadd.f32 %v1619, %v1629
        %v1635 = vadd.f32 %v1620, %v1629
        %v1636 = vadd.f32 %v1621, %v1629
        %v1637 = vadd.f32 %v1622, %v1629
        %v1638 = vadd.f32 %v1623, %v1629
        %1639 = vst [vmem:[%s248] sm:$0xff] %v1631
        %1640 = vst [vmem:[%s248 + $0x8] sm:$0xff] %v1632
        %1641 = vst [vmem:[%s248 + $0x10] sm:$0xff] %v1633
        %1642 = vst [vmem:[%s248 + $0x18] sm:$0xff] %v1634
        %1643 = vst [vmem:[%s248 + $0x20] sm:$0xff] %v1635
        %1644 = vst [vmem:[%s248 + $0x28] sm:$0xff] %v1636
        %1645 = vst [vmem:[%s248 + $0x30] sm:$0xff] %v1637
        %1646 = vst [vmem:[%s248 + $0x38] sm:$0xff] %v1638
        %s1647 = sand.u32 %s153, 1
        %s1648 = scalar_lea.sflag [#allocation3], %s1647
        %s1649 = sand.u32 %s153, 1
        %s1650 = smul.addr %s1649, 64
        %s1651 = scalar_lea.vmem [#allocation2], %s1650
        // Predicated region
        $region37: #{tpu_custom_call.1} parent=35 // pred_check
          %p1652 = pneg %p163
        $region38: #{tpu_custom_call.1} parent=35 // pred_check_branch
          %1654 = sbr.rel (%p1652) target = $region40
        $region39: #{tpu_custom_call.1} parent=35 // pred_region
          %s1655 = smul.u32 4, %s25
          %s1657 = ssub.s32 1024, 1024
          %1658 = vsyncadd %s1648, %s1657
          %s1659 = smul.addr %s1655, 2
          %s1660 = sadd.s32 %s24, %s1659
          %s1661 = smul.addr %s23, 32
          %s1662 = sadd.s32 %s1660, %s1661
          %s1663 = smul.addr %s1662, 128
          %s1664 = scalar_lea.hbm %s4, %s1663
          %s1665 = sshll.u32 %s1651, 4
          %s1666 = int_to_ptr.vmem [resolvable:$true] %s1665
          %1671 = dma.vmem_to_hbm [thread:$0]  %s1666, 1024, %s1664, %s1648, 128, 128, 8
        $region40: #{tpu_custom_call.1} parent=35 // pred_fallthru
          _
      $region36: #{tpu_custom_call.1} parent=5 // pred_fallthru
        _
      %p1672 = scmp.le.s32.totalorder 2, %s13
      // Predicated region
      $region41: #{tpu_custom_call.1} parent=5 // pred_check
        %p1673 = pneg %p1672
      $region42: #{tpu_custom_call.1} parent=5 // pred_check_branch
        %1675 = sbr.rel (%p1673) target = $region44
      $region43: #{tpu_custom_call.1} parent=5 // pred_region
        %s1676 = ssub.s32 %s13, 2
        // Predicated region
        $region45: #{tpu_custom_call.1} parent=43 // pred_check
          %p1677 = pneg %p169
        $region46: #{tpu_custom_call.1} parent=43 // pred_check_branch
          %1679 = sbr.rel (%p1677) target = $region48
        $region47: #{tpu_custom_call.1} parent=43 // pred_region
          %s1680 = sand.u32 %s154, 1
          %s1681 = scalar_lea.sflag [#allocation3], %s1680
          %s1682 = sand.u32 %s154, 1
          %s1683 = smul.addr %s1682, 64
          %s1684 = scalar_lea.vmem [#allocation2], %s1683
          %1685 = dma.done %s1681, 1024
        $region48: #{tpu_custom_call.1} parent=43 // pred_fallthru
          _
      $region44: #{tpu_custom_call.1} parent=5 // pred_fallthru
        _
    $region6: #{tpu_custom_call.1} parent=1 // loop_footer
      %s17 = sadd.s32 1, %s13
    $region7: #{tpu_custom_call.1} parent=1 // loop_footer_branch
      %12 = sbr.rel target = $region3
    $region8: #{tpu_custom_call.1} parent=1 // loop_exit
      _
    %1686 = vsyncpa [#allocation3], 1
    %s1687 = scalar_lea.sflag [#allocation3], 1
    %1688 = vsyncpa %s1687, 1

</llo_original>
